<compile_context>
chip_gen: v5e
topology: v5e:2x2
jax: 0.10.0
libtpu: 0.0.40
codegen_flags: <defaults>
</compile_context>

<pallas_src>
import numpy as np

import jax
import jax.numpy as jnp
from jax import lax
from jax.experimental import pallas as pl
from jax.experimental.pallas import tpu as pltpu

NUM_CANDS = 8          # stands in for the many-candidate original
SEQ = 8
HIDDEN = 32
N_HEADS = 2
HEAD_DIM = HIDDEN // N_HEADS
INTERMEDIATE = 4 * HIDDEN
VOCAB = 64
TYPE_VOCAB = 2

_ATTN_SCALE = 1.0 / float(HEAD_DIM) ** 0.5


# --------------------------- shared math helpers -----------------------------
# (used both inside the Pallas kernel and in the plain-JAX reference so the
#  two traces are op-for-op identical)

def _dot_bf16(a, b):
    """MXU matmul with bf16 operands and f32 accumulation."""
    return jnp.dot(a.astype(jnp.bfloat16), b.astype(jnp.bfloat16),
                   preferred_element_type=jnp.float32)


def _layer_norm(x, g, b, eps=1e-12):
    mu = jnp.mean(x, axis=-1, keepdims=True)
    var = jnp.mean((x - mu) ** 2, axis=-1, keepdims=True)
    return (x - mu) * lax.rsqrt(var + eps) * g + b


# --------------------------- fused Pallas kernel -----------------------------

def _fused_bert_ranker_kernel(
        h_ref, bias_ref,
        wqkv_ref, bqkv_ref, wo_ref, bo_ref,
        wff1_ref, bff1_ref, wff2_ref, bff2_ref,
        wpool_ref, bpool_ref,
        watt1_ref, batt1_ref, watt2_ref, batt2_ref,
        embg_ref, embb_ref, attng_ref, attnb_ref, ffng_ref, ffnb_ref,
        misc_ref, logits_ref, pooled_ref):
    N, S, H, HD = NUM_CANDS, SEQ, HIDDEN, HEAD_DIM
    f32, bf16 = jnp.float32, jnp.bfloat16

    # ---- embedding layer norm ------------------------------------------------
    x = _layer_norm(h_ref[...], embg_ref[...], embb_ref[...])          # [N*S, H]

    # ---- self-attention: single fused QKV matmul, then per-head attention ----
    qkv = _dot_bf16(x, wqkv_ref[...]) + bqkv_ref[...]                  # [N*S, 3H]
    bias = bias_ref[...]                                               # [N, 1, S]
    wo = wo_ref[...]                                                   # [H, H]
    attn_out = jnp.zeros((N * S, H), f32)
    for hh in range(N_HEADS):
        qh = qkv[:, hh * HD:(hh + 1) * HD].reshape(N, S, HD)
        kh = qkv[:, H + hh * HD:H + (hh + 1) * HD].reshape(N, S, HD)
        vh = qkv[:, 2 * H + hh * HD:2 * H + (hh + 1) * HD].reshape(N, S, HD)
        sc = jnp.einsum("nqd,nkd->nqk", qh.astype(bf16), kh.astype(bf16),
                        preferred_element_type=f32) * _ATTN_SCALE + bias
        p = jnp.exp(sc - jnp.max(sc, axis=-1, keepdims=True))
        p = p / jnp.sum(p, axis=-1, keepdims=True)
        ctx = jnp.einsum("nqk,nkd->nqd", p.astype(bf16), vh.astype(bf16),
                         preferred_element_type=f32)                   # [N, S, HD]
        # concat_h(ctx_h) @ wo  ==  sum_h ctx_h @ wo[h*HD:(h+1)*HD, :]
        attn_out = attn_out + _dot_bf16(ctx.reshape(N * S, HD),
                                        wo[hh * HD:(hh + 1) * HD, :])
    attn_out = attn_out + bo_ref[...]
    x1 = _layer_norm(x + attn_out, attng_ref[...], attnb_ref[...])

    # ---- feed-forward ----------------------------------------------------------
    ff = jax.nn.gelu(_dot_bf16(x1, wff1_ref[...]) + bff1_ref[...], approximate=True)
    ff = _dot_bf16(ff, wff2_ref[...]) + bff2_ref[...]
    x2 = _layer_norm(x1 + ff, ffng_ref[...], ffnb_ref[...])            # [N*S, H]

    # ---- BERT pooler (CLS token, tanh); dropout(p=0.1) is identity in eval ----
    cls = x2.reshape(N, S, H)[:, 0, :]                                 # [N, H]
    pooled = jnp.tanh(_dot_bf16(cls, wpool_ref[...]) + bpool_ref[...])
    pooled_ref[...] = pooled

    # ---- ranker head: Linear -> LeakyReLU(0.2) -> Linear -> Tanh ---------------
    z = _dot_bf16(pooled, watt1_ref[...]) + batt1_ref[...]
    z = jnp.where(z >= 0.0, z, 0.2 * z)
    # lane-major logits [1, N]: contract the w_att2 row against z over H
    # (replaces the degenerate [N,H]@[H,1] matmul).
    logits = jnp.tanh(
        lax.dot_general(watt2_ref[...].astype(bf16), z.astype(bf16),
                        (((1,), (1,)), ((), ())),
                        preferred_element_type=f32) + batt2_ref[...])
    logits_ref[...] = logits

    lane = lax.broadcasted_iota(jnp.int32, (1, N), 1)
    # softmax is monotone -> argmax over logits directly (dead softmax dropped);
    # first occurrence on ties, like torch.argmax.
    pmax = jnp.max(logits, axis=-1, keepdims=True)
    arg = jnp.min(jnp.where(logits >= pmax, lane, N), axis=-1, keepdims=True)
    score = pmax                     # attention_dense(pooled[argmax]) == max logit

    # MarginRankingLoss(margin=1, y=+1), positive = candidate 0,
    # averaged over the N-1 negatives.
    pos = logits[:, 0:1]
    margins = jnp.maximum(0.0, logits - pos + 1.0)
    loss = jnp.sum(jnp.where(lane >= 1, margins, 0.0),
                   axis=-1, keepdims=True) / float(N - 1)

    # pack the three scalar results into one lane-dense row: [loss, score, argmax]
    lane128 = lax.broadcasted_iota(jnp.int32, (1, 128), 1)
    misc_ref[...] = jnp.where(lane128 == 0, loss,
                    jnp.where(lane128 == 1, score,
                    jnp.where(lane128 == 2, arg.astype(f32), 0.0)))


# --------------------------- pallas_call wrapper ------------------------------

_WEIGHT_KEYS = (
    "w_qkv", "b_qkv", "w_o", "b_o",
    "w_ff1", "b_ff1", "w_ff2", "b_ff2",
    "w_pool", "b_pool",
    "w_att1", "b_att1", "w_att2_row", "b_att2",
    "emb_ln_g", "emb_ln_b", "attn_ln_g", "attn_ln_b", "ffn_ln_g", "ffn_ln_b",
)


def _cost_estimate():
    ns = NUM_CANDS * SEQ
    flops = 2 * ns * HIDDEN * 3 * HIDDEN                            # fused QKV
    flops += 2 * NUM_CANDS * N_HEADS * SEQ * SEQ * HEAD_DIM * 2     # qk^T and p@v
    flops += 2 * ns * HIDDEN * HIDDEN                               # output proj
    flops += 2 * ns * HIDDEN * INTERMEDIATE * 2                     # ff1 + ff2
    flops += 2 * NUM_CANDS * HIDDEN * HIDDEN * 2                    # pooler, att1
    flops += 2 * NUM_CANDS * HIDDEN                                 # att2 row dot
    trans = NUM_CANDS * N_HEADS * SEQ * SEQ                         # exp
    trans += ns * INTERMEDIATE + NUM_CANDS * (HIDDEN + 1)           # gelu/tanh
    bytes_accessed = 4 * (ns * HIDDEN + NUM_CANDS * SEQ
                          + HIDDEN * 3 * HIDDEN + 3 * HIDDEN
                          + 3 * HIDDEN * HIDDEN + 3 * HIDDEN
                          + 2 * HIDDEN * INTERMEDIATE + INTERMEDIATE + HIDDEN
                          + 7 * HIDDEN + 2
                          + 128 + NUM_CANDS + NUM_CANDS * HIDDEN)
    return pl.CostEstimate(flops=flops, transcendentals=trans,
                           bytes_accessed=bytes_accessed)


def _fused_forward(h2d, attn_bias, params):
    operands = [h2d, attn_bias] + [params[k] for k in _WEIGHT_KEYS]
    vmem = pl.BlockSpec(memory_space=pltpu.MemorySpace.VMEM)
    # No grid: the whole problem (~150 KB of weights + activations) lives in
    # VMEM for a single invocation.  At production size (768 candidates,
    # H=768) add a candidate grid with dimension_semantics=("parallel", ...,
    # "arbitrary") and re-derive tile sizes per-generation VMEM budget.
    misc, logits, pooled = pl.pallas_call(
        _fused_bert_ranker_kernel,
        out_shape=(
            jax.ShapeDtypeStruct((1, 128), jnp.float32),             # loss|score|argmax
            jax.ShapeDtypeStruct((1, NUM_CANDS), jnp.float32),       # head logits (debug)
            jax.ShapeDtypeStruct((NUM_CANDS, HIDDEN), jnp.float32),  # pooled (debug)
        ),
        in_specs=[vmem] * len(operands),
        out_specs=(vmem, vmem, vmem),
        cost_estimate=_cost_estimate(),
    )(*operands)
    return misc, logits, pooled


def bert_ranker_forward(params, input_ids, attention_mask, token_type_ids,
                        labels=None):
    """Returns ((loss, argmax_index, argmax_score), (pooled, logits))."""
    del labels  # only builds a dead tensor in the original forward()
    N, S = input_ids.shape
    # Token/position/type embedding gathers stay in XLA (data-dependent gather,
    # not worth a Pallas DMA gather at this size).
    h = (params["word_emb"][input_ids]
         + params["pos_emb"][None, :, :]
         + params["type_emb"][token_type_ids])
    h2d = h.reshape(N * S, HIDDEN)
    attn_bias = ((1.0 - attention_mask.astype(jnp.float32)) * -10000.0)[:, None, :]
    misc, logits, pooled = _fused_forward(h2d, attn_bias, params)
    loss = misc[0, 0]
    score = misc[0, 1:2]                       # shape (1,), like torch
    # TODO(synk): torch.argmax returns int64; returned as int32 (TPU-native).
    idx = jnp.round(misc[0, 2]).astype(jnp.int32)
    return (loss, idx, score), (pooled, logits[0])


# --------------------------- params & reference -------------------------------

def init_params(key):
    ks = jax.random.split(key, 24)
    s = 0.05
    def n(i, shape):
        return jax.random.normal(ks[i], shape, jnp.float32) * s
    p = {
        "word_emb": n(0, (VOCAB, HIDDEN)),
        "pos_emb": n(1, (SEQ, HIDDEN)),
        "type_emb": n(2, (TYPE_VOCAB, HIDDEN)),
        "emb_ln_g": jnp.ones((1, HIDDEN), jnp.float32),
        "emb_ln_b": jnp.zeros((1, HIDDEN), jnp.float32),
        # fused QKV projection (wq|wk|wv concatenated along the output axis)
        "w_qkv": n(3, (HIDDEN, 3 * HIDDEN)),
        "b_qkv": n(4, (1, 3 * HIDDEN)),
        "w_o": n(5, (HIDDEN, HIDDEN)),
        "b_o": n(6, (1, HIDDEN)),
        "attn_ln_g": jnp.ones((1, HIDDEN), jnp.float32),
        "attn_ln_b": jnp.zeros((1, HIDDEN), jnp.float32),
        "w_ff1": n(7, (HIDDEN, INTERMEDIATE)),
        "b_ff1": n(8, (1, INTERMEDIATE)),
        "w_ff2": n(9, (INTERMEDIATE, HIDDEN)),
        "b_ff2": n(10, (1, HIDDEN)),
        "ffn_ln_g": jnp.ones((1, HIDDEN), jnp.float32),
        "ffn_ln_b": jnp.zeros((1, HIDDEN), jnp.float32),
        "w_pool": n(11, (HIDDEN, HIDDEN)),
        "b_pool": n(12, (1, HIDDEN)),
        # attention_dense: Linear(H,H) -> LeakyReLU(0.2) -> Linear(H,1) -> Tanh
        "w_att1": n(13, (HIDDEN, HIDDEN)),
        "b_att1": n(14, (1, HIDDEN)),
        "w_att2_row": n(15, (1, HIDDEN)),     # Linear(H, 1) weight stored as a row
        "b_att2": n(16, (1, 1)),
        # nil_classifier: present in the module but unused in forward()
        "w_nil1": n(17, (HIDDEN, HIDDEN)),
        "b_nil1": n(18, (1, HIDDEN)),
        "w_nil2": n(19, (HIDDEN, 2)),
        "b_nil2": n(20, (1, 2)),
    }
    return p


def reference_forward(params, input_ids, attention_mask, token_type_ids):
    """Plain-JAX mirror of the fused kernel's math (same bf16 dot boundaries)."""
    N, S, H, HD = NUM_CANDS, SEQ, HIDDEN, HEAD_DIM
    h = (params["word_emb"][input_ids]
         + params["pos_emb"][None, :, :]
         + params["type_emb"][token_type_ids])
    x = _layer_norm(h.reshape(N * S, H), params["emb_ln_g"], params["emb_ln_b"])
    qkv = _dot_bf16(x, params["w_qkv"]) + params["b_qkv"]
    bias = ((1.0 - attention_mask.astype(jnp.float32)) * -10000.0)[:, None, :]
    attn_out = jnp.zeros((N * S, H), jnp.float32)
    wo = params["w_o"]
    for hh in range(N_HEADS):
        qh = qkv[:, hh * HD:(hh + 1) * HD].reshape(N, S, HD)
        kh = qkv[:, H + hh * HD:H + (hh + 1) * HD].reshape(N, S, HD)
        vh = qkv[:, 2 * H + hh * HD:2 * H + (hh + 1) * HD].reshape(N, S, HD)
        sc = jnp.einsum("nqd,nkd->nqk", qh.astype(jnp.bfloat16),
                        kh.astype(jnp.bfloat16),
                        preferred_element_type=jnp.float32) * _ATTN_SCALE + bias
        p = jnp.exp(sc - jnp.max(sc, axis=-1, keepdims=True))
        p = p / jnp.sum(p, axis=-1, keepdims=True)
        ctx = jnp.einsum("nqk,nkd->nqd", p.astype(jnp.bfloat16),
                         vh.astype(jnp.bfloat16),
                         preferred_element_type=jnp.float32)
        attn_out = attn_out + _dot_bf16(ctx.reshape(N * S, HD),
                                        wo[hh * HD:(hh + 1) * HD, :])
    attn_out = attn_out + params["b_o"]
    x1 = _layer_norm(x + attn_out, params["attn_ln_g"], params["attn_ln_b"])
    ff = jax.nn.gelu(_dot_bf16(x1, params["w_ff1"]) + params["b_ff1"],
                     approximate=True)
    ff = _dot_bf16(ff, params["w_ff2"]) + params["b_ff2"]
    x2 = _layer_norm(x1 + ff, params["ffn_ln_g"], params["ffn_ln_b"])
    cls = x2.reshape(N, S, H)[:, 0, :]
    pooled = jnp.tanh(_dot_bf16(cls, params["w_pool"]) + params["b_pool"])
    z = _dot_bf16(pooled, params["w_att1"]) + params["b_att1"]
    z = jnp.where(z >= 0.0, z, 0.2 * z)
    logits = jnp.tanh(
        lax.dot_general(params["w_att2_row"].astype(jnp.bfloat16),
                        z.astype(jnp.bfloat16),
                        (((1,), (1,)), ((), ())),
                        preferred_element_type=jnp.float32)
        + params["b_att2"])[0]                                       # [N]
    idx = jnp.argmax(logits)
    loss = jnp.mean(jnp.maximum(0.0, -(logits[0] - logits[1:]) + 1.0))
    score = logits[idx]
    return loss, idx, score, pooled, logits


# ------------------------------- driver ---------------------------------------

if __name__ == "__main__":
    key = jax.random.PRNGKey(0)
    k_ids, k_params = jax.random.split(key)
    input_ids = jax.random.randint(k_ids, (NUM_CANDS, SEQ), 0, VOCAB,
                                   dtype=jnp.int32)
    attention_mask = jnp.ones((NUM_CANDS, SEQ), jnp.int32)
    token_type_ids = jnp.zeros((NUM_CANDS, SEQ), jnp.int32)
    params = init_params(k_params)

    fwd = jax.jit(bert_ranker_forward)
    (loss, arg_idx, arg_score), (pooled, klogits) = fwd(
        params, input_ids, attention_mask, token_type_ids)
    jax.block_until_ready((loss, arg_idx, arg_score, pooled, klogits))

    # --- check 1: argmax / score / margin-loss semantics are exact w.r.t. the
    #     kernel's own logits (no precision ambiguity) -------------------------
    kl = np.asarray(klogits, dtype=np.float64)
    sem_idx = int(np.argmax(kl))
    sem_loss = float(np.mean(np.maximum(0.0, -(kl[0] - kl[1:]) + 1.0)))
    assert int(arg_idx) == sem_idx, (int(arg_idx), sem_idx)
    assert abs(float(loss) - sem_loss) < 1e-5, (float(loss), sem_loss)
    assert abs(float(arg_score[0]) - float(kl[sem_idx])) < 1e-6

    # --- check 2: fused encoder matches the plain-JAX reference ---------------
    r_loss, r_idx, r_score, r_pooled, r_logits = reference_forward(
        params, input_ids, attention_mask, token_type_ids)
    assert float(jnp.max(jnp.abs(pooled - r_pooled))) < 2e-3
    assert float(jnp.max(jnp.abs(klogits - r_logits))) < 2e-3
    assert abs(float(loss) - float(r_loss)) < 2e-3
    assert abs(float(arg_score[0]) - float(r_score)) < 2e-3
    srt = jnp.sort(r_logits)
    if float(srt[-1] - srt[-2]) > 1e-3:      # guard against numerical near-ties
        assert int(arg_idx) == int(r_idx)

    print("KERNEL_OK")
</pallas_src>

<mosaic_0001>
module attributes {stable_mosaic.version = 11 : i64} {
  func.func @_fused_bert_ranker_kernel(%arg0: memref<64x32xf32, #tpu.memory_space<vmem>>, %arg1: memref<8x1x8xf32, #tpu.memory_space<vmem>>, %arg2: memref<32x96xf32, #tpu.memory_space<vmem>>, %arg3: memref<1x96xf32, #tpu.memory_space<vmem>>, %arg4: memref<32x32xf32, #tpu.memory_space<vmem>>, %arg5: memref<1x32xf32, #tpu.memory_space<vmem>>, %arg6: memref<32x128xf32, #tpu.memory_space<vmem>>, %arg7: memref<1x128xf32, #tpu.memory_space<vmem>>, %arg8: memref<128x32xf32, #tpu.memory_space<vmem>>, %arg9: memref<1x32xf32, #tpu.memory_space<vmem>>, %arg10: memref<32x32xf32, #tpu.memory_space<vmem>>, %arg11: memref<1x32xf32, #tpu.memory_space<vmem>>, %arg12: memref<32x32xf32, #tpu.memory_space<vmem>>, %arg13: memref<1x32xf32, #tpu.memory_space<vmem>>, %arg14: memref<1x32xf32, #tpu.memory_space<vmem>>, %arg15: memref<1x1xf32, #tpu.memory_space<vmem>>, %arg16: memref<1x32xf32, #tpu.memory_space<vmem>>, %arg17: memref<1x32xf32, #tpu.memory_space<vmem>>, %arg18: memref<1x32xf32, #tpu.memory_space<vmem>>, %arg19: memref<1x32xf32, #tpu.memory_space<vmem>>, %arg20: memref<1x32xf32, #tpu.memory_space<vmem>>, %arg21: memref<1x32xf32, #tpu.memory_space<vmem>>, %arg22: memref<1x128xf32, #tpu.memory_space<vmem>>, %arg23: memref<1x8xf32, #tpu.memory_space<vmem>>, %arg24: memref<8x32xf32, #tpu.memory_space<vmem>>) attributes {dimension_semantics = [], scalar_prefetch = 0 : i64, scratch_operands = 0 : i64, tpu.core_type = #tpu.core_type<tc>} {
    %c0 = arith.constant 0 : index
    %c0_0 = arith.constant 0 : index
    %0 = vector.load %arg0[%c0, %c0_0] : memref<64x32xf32, #tpu.memory_space<vmem>>, vector<64x32xf32>
    %c0_1 = arith.constant 0 : index
    %c0_2 = arith.constant 0 : index
    %1 = vector.load %arg16[%c0_1, %c0_2] : memref<1x32xf32, #tpu.memory_space<vmem>>, vector<1x32xf32>
    %c0_3 = arith.constant 0 : index
    %c0_4 = arith.constant 0 : index
    %2 = vector.load %arg17[%c0_3, %c0_4] : memref<1x32xf32, #tpu.memory_space<vmem>>, vector<1x32xf32>
    %cst = arith.constant dense<0.000000e+00> : vector<64xf32>
    %3 = vector.multi_reduction <add>, %0, %cst [1] : vector<64x32xf32> to vector<64xf32>
    %4 = vector.shape_cast %3 : vector<64xf32> to vector<64x1xf32>
    %cst_5 = arith.constant 3.200000e+01 : f32
    %5 = vector.broadcast %cst_5 : f32 to vector<64x1xf32>
    %6 = arith.divf %4, %5 : vector<64x1xf32>
    %7 = vector.broadcast %6 : vector<64x1xf32> to vector<64x32xf32>
    %8 = arith.subf %0, %7 : vector<64x32xf32>
    %9 = arith.mulf %8, %8 : vector<64x32xf32>
    %cst_6 = arith.constant dense<0.000000e+00> : vector<64xf32>
    %10 = vector.multi_reduction <add>, %9, %cst_6 [1] : vector<64x32xf32> to vector<64xf32>
    %11 = vector.shape_cast %10 : vector<64xf32> to vector<64x1xf32>
    %cst_7 = arith.constant 3.200000e+01 : f32
    %12 = vector.broadcast %cst_7 : f32 to vector<64x1xf32>
    %13 = arith.divf %11, %12 : vector<64x1xf32>
    %14 = vector.broadcast %6 : vector<64x1xf32> to vector<64x32xf32>
    %15 = arith.subf %0, %14 : vector<64x32xf32>
    %cst_8 = arith.constant 9.99999996E-13 : f32
    %16 = vector.broadcast %cst_8 : f32 to vector<64x1xf32>
    %17 = arith.addf %13, %16 : vector<64x1xf32>
    %18 = math.rsqrt %17 : vector<64x1xf32>
    %19 = vector.broadcast %18 : vector<64x1xf32> to vector<64x32xf32>
    %20 = arith.mulf %15, %19 : vector<64x32xf32>
    %21 = vector.broadcast %1 : vector<1x32xf32> to vector<64x32xf32>
    %22 = arith.mulf %20, %21 : vector<64x32xf32>
    %23 = vector.broadcast %2 : vector<1x32xf32> to vector<64x32xf32>
    %24 = arith.addf %22, %23 : vector<64x32xf32>
    %c0_9 = arith.constant 0 : index
    %c0_10 = arith.constant 0 : index
    %25 = vector.load %arg2[%c0_9, %c0_10] : memref<32x96xf32, #tpu.memory_space<vmem>>, vector<32x96xf32>
    %26 = arith.truncf %24 : vector<64x32xf32> to vector<64x32xbf16>
    %27 = arith.truncf %25 : vector<32x96xf32> to vector<32x96xbf16>
    %cst_11 = arith.constant dense<0.000000e+00> : vector<64x96xf32>
    %28 = tpu.matmul %26, %27, %cst_11 {dimension_numbers = #tpu.dot_dimension_numbers<[1], [0], [0], [1], [0, 0, 1, 1], [], []>} : vector<64x32xbf16>, vector<32x96xbf16>, vector<64x96xf32> -> vector<64x96xf32>
    %c0_12 = arith.constant 0 : index
    %c0_13 = arith.constant 0 : index
    %29 = vector.load %arg3[%c0_12, %c0_13] : memref<1x96xf32, #tpu.memory_space<vmem>>, vector<1x96xf32>
    %30 = vector.broadcast %29 : vector<1x96xf32> to vector<64x96xf32>
    %31 = arith.addf %28, %30 : vector<64x96xf32>
    %c0_14 = arith.constant 0 : index
    %c0_15 = arith.constant 0 : index
    %c0_16 = arith.constant 0 : index
    %32 = vector.load %arg1[%c0_14, %c0_15, %c0_16] : memref<8x1x8xf32, #tpu.memory_space<vmem>>, vector<8x1x8xf32>
    %c0_17 = arith.constant 0 : index
    %c0_18 = arith.constant 0 : index
    %33 = vector.load %arg4[%c0_17, %c0_18] : memref<32x32xf32, #tpu.memory_space<vmem>>, vector<32x32xf32>
    %cst_19 = arith.constant 0.000000e+00 : f32
    %34 = vector.broadcast %cst_19 : f32 to vector<64x32xf32>
    %35 = vector.extract_strided_slice %31 {offsets = [0, 0], sizes = [64, 16], strides = [1, 1]} : vector<64x96xf32> to vector<64x16xf32>
    %36 = vector.shape_cast %35 : vector<64x16xf32> to vector<8x8x16xf32>
    %37 = vector.extract_strided_slice %31 {offsets = [0, 32], sizes = [64, 16], strides = [1, 1]} : vector<64x96xf32> to vector<64x16xf32>
    %38 = vector.shape_cast %37 : vector<64x16xf32> to vector<8x8x16xf32>
    %39 = vector.extract_strided_slice %31 {offsets = [0, 64], sizes = [64, 16], strides = [1, 1]} : vector<64x96xf32> to vector<64x16xf32>
    %40 = vector.shape_cast %39 : vector<64x16xf32> to vector<8x8x16xf32>
    %41 = arith.truncf %36 : vector<8x8x16xf32> to vector<8x8x16xbf16>
    %42 = arith.truncf %38 : vector<8x8x16xf32> to vector<8x8x16xbf16>
    "tpu.trace_start"() <{level = 10 : i32, message = "nqd,nkd->nqk"}> : () -> ()
    %cst_20 = arith.constant dense<0.000000e+00> : vector<8x8x8xf32>
    %43 = tpu.matmul %41, %42, %cst_20 {dimension_numbers = #tpu.dot_dimension_numbers<[2], [2], [1], [1], [0, 0, 0, 1, 1, 1], [0], [0]>} : vector<8x8x16xbf16>, vector<8x8x16xbf16>, vector<8x8x8xf32> -> vector<8x8x8xf32>
    "tpu.trace_stop"() : () -> ()
    %cst_21 = arith.constant 2.500000e-01 : f32
    %44 = vector.broadcast %cst_21 : f32 to vector<8x8x8xf32>
    %45 = arith.mulf %43, %44 : vector<8x8x8xf32>
    %46 = vector.broadcast %32 : vector<8x1x8xf32> to vector<8x8x8xf32>
    %47 = arith.addf %45, %46 : vector<8x8x8xf32>
    %cst_22 = arith.constant dense<0xFF800000> : vector<8x8xf32>
    %48 = vector.multi_reduction <maximumf>, %47, %cst_22 [2] : vector<8x8x8xf32> to vector<8x8xf32>
    %49 = vector.shape_cast %48 : vector<8x8xf32> to vector<8x8x1xf32>
    %50 = vector.broadcast %49 : vector<8x8x1xf32> to vector<8x8x8xf32>
    %51 = arith.subf %47, %50 : vector<8x8x8xf32>
    %52 = math.exp %51 : vector<8x8x8xf32>
    %cst_23 = arith.constant dense<0.000000e+00> : vector<8x8xf32>
    %53 = vector.multi_reduction <add>, %52, %cst_23 [2] : vector<8x8x8xf32> to vector<8x8xf32>
    %54 = vector.shape_cast %53 : vector<8x8xf32> to vector<8x8x1xf32>
    %55 = vector.broadcast %54 : vector<8x8x1xf32> to vector<8x8x8xf32>
    %56 = arith.divf %52, %55 : vector<8x8x8xf32>
    %57 = arith.truncf %56 : vector<8x8x8xf32> to vector<8x8x8xbf16>
    %58 = arith.truncf %40 : vector<8x8x16xf32> to vector<8x8x16xbf16>
    "tpu.trace_start"() <{level = 10 : i32, message = "nqk,nkd->nqd"}> : () -> ()
    %cst_24 = arith.constant dense<0.000000e+00> : vector<8x8x16xf32>
    %59 = tpu.matmul %57, %58, %cst_24 {dimension_numbers = #tpu.dot_dimension_numbers<[2], [1], [1], [2], [0, 0, 0, 1, 1, 2], [0], [0]>} : vector<8x8x8xbf16>, vector<8x8x16xbf16>, vector<8x8x16xf32> -> vector<8x8x16xf32>
    "tpu.trace_stop"() : () -> ()
    %60 = vector.shape_cast %59 : vector<8x8x16xf32> to vector<64x16xf32>
    %61 = vector.extract_strided_slice %33 {offsets = [0, 0], sizes = [16, 32], strides = [1, 1]} : vector<32x32xf32> to vector<16x32xf32>
    %62 = arith.truncf %60 : vector<64x16xf32> to vector<64x16xbf16>
    %63 = arith.truncf %61 : vector<16x32xf32> to vector<16x32xbf16>
    %cst_25 = arith.constant dense<0.000000e+00> : vector<64x32xf32>
    %64 = tpu.matmul %62, %63, %cst_25 {dimension_numbers = #tpu.dot_dimension_numbers<[1], [0], [0], [1], [0, 0, 1, 1], [], []>} : vector<64x16xbf16>, vector<16x32xbf16>, vector<64x32xf32> -> vector<64x32xf32>
    %65 = arith.addf %34, %64 : vector<64x32xf32>
    %66 = vector.extract_strided_slice %31 {offsets = [0, 16], sizes = [64, 16], strides = [1, 1]} : vector<64x96xf32> to vector<64x16xf32>
    %67 = vector.shape_cast %66 : vector<64x16xf32> to vector<8x8x16xf32>
    %68 = vector.extract_strided_slice %31 {offsets = [0, 48], sizes = [64, 16], strides = [1, 1]} : vector<64x96xf32> to vector<64x16xf32>
    %69 = vector.shape_cast %68 : vector<64x16xf32> to vector<8x8x16xf32>
    %70 = vector.extract_strided_slice %31 {offsets = [0, 80], sizes = [64, 16], strides = [1, 1]} : vector<64x96xf32> to vector<64x16xf32>
    %71 = vector.shape_cast %70 : vector<64x16xf32> to vector<8x8x16xf32>
    %72 = arith.truncf %67 : vector<8x8x16xf32> to vector<8x8x16xbf16>
    %73 = arith.truncf %69 : vector<8x8x16xf32> to vector<8x8x16xbf16>
    "tpu.trace_start"() <{level = 10 : i32, message = "nqd,nkd->nqk"}> : () -> ()
    %cst_26 = arith.constant dense<0.000000e+00> : vector<8x8x8xf32>
    %74 = tpu.matmul %72, %73, %cst_26 {dimension_numbers = #tpu.dot_dimension_numbers<[2], [2], [1], [1], [0, 0, 0, 1, 1, 1], [0], [0]>} : vector<8x8x16xbf16>, vector<8x8x16xbf16>, vector<8x8x8xf32> -> vector<8x8x8xf32>
    "tpu.trace_stop"() : () -> ()
    %cst_27 = arith.constant 2.500000e-01 : f32
    %75 = vector.broadcast %cst_27 : f32 to vector<8x8x8xf32>
    %76 = arith.mulf %74, %75 : vector<8x8x8xf32>
    %77 = vector.broadcast %32 : vector<8x1x8xf32> to vector<8x8x8xf32>
    %78 = arith.addf %76, %77 : vector<8x8x8xf32>
    %cst_28 = arith.constant dense<0xFF800000> : vector<8x8xf32>
    %79 = vector.multi_reduction <maximumf>, %78, %cst_28 [2] : vector<8x8x8xf32> to vector<8x8xf32>
    %80 = vector.shape_cast %79 : vector<8x8xf32> to vector<8x8x1xf32>
    %81 = vector.broadcast %80 : vector<8x8x1xf32> to vector<8x8x8xf32>
    %82 = arith.subf %78, %81 : vector<8x8x8xf32>
    %83 = math.exp %82 : vector<8x8x8xf32>
    %cst_29 = arith.constant dense<0.000000e+00> : vector<8x8xf32>
    %84 = vector.multi_reduction <add>, %83, %cst_29 [2] : vector<8x8x8xf32> to vector<8x8xf32>
    %85 = vector.shape_cast %84 : vector<8x8xf32> to vector<8x8x1xf32>
    %86 = vector.broadcast %85 : vector<8x8x1xf32> to vector<8x8x8xf32>
    %87 = arith.divf %83, %86 : vector<8x8x8xf32>
    %88 = arith.truncf %87 : vector<8x8x8xf32> to vector<8x8x8xbf16>
    %89 = arith.truncf %71 : vector<8x8x16xf32> to vector<8x8x16xbf16>
    "tpu.trace_start"() <{level = 10 : i32, message = "nqk,nkd->nqd"}> : () -> ()
    %cst_30 = arith.constant dense<0.000000e+00> : vector<8x8x16xf32>
    %90 = tpu.matmul %88, %89, %cst_30 {dimension_numbers = #tpu.dot_dimension_numbers<[2], [1], [1], [2], [0, 0, 0, 1, 1, 2], [0], [0]>} : vector<8x8x8xbf16>, vector<8x8x16xbf16>, vector<8x8x16xf32> -> vector<8x8x16xf32>
    "tpu.trace_stop"() : () -> ()
    %91 = vector.shape_cast %90 : vector<8x8x16xf32> to vector<64x16xf32>
    %92 = vector.extract_strided_slice %33 {offsets = [16, 0], sizes = [16, 32], strides = [1, 1]} : vector<32x32xf32> to vector<16x32xf32>
    %93 = arith.truncf %91 : vector<64x16xf32> to vector<64x16xbf16>
    %94 = arith.truncf %92 : vector<16x32xf32> to vector<16x32xbf16>
    %cst_31 = arith.constant dense<0.000000e+00> : vector<64x32xf32>
    %95 = tpu.matmul %93, %94, %cst_31 {dimension_numbers = #tpu.dot_dimension_numbers<[1], [0], [0], [1], [0, 0, 1, 1], [], []>} : vector<64x16xbf16>, vector<16x32xbf16>, vector<64x32xf32> -> vector<64x32xf32>
    %96 = arith.addf %65, %95 : vector<64x32xf32>
    %c0_32 = arith.constant 0 : index
    %c0_33 = arith.constant 0 : index
    %97 = vector.load %arg5[%c0_32, %c0_33] : memref<1x32xf32, #tpu.memory_space<vmem>>, vector<1x32xf32>
    %98 = vector.broadcast %97 : vector<1x32xf32> to vector<64x32xf32>
    %99 = arith.addf %96, %98 : vector<64x32xf32>
    %100 = arith.addf %24, %99 : vector<64x32xf32>
    %c0_34 = arith.constant 0 : index
    %c0_35 = arith.constant 0 : index
    %101 = vector.load %arg18[%c0_34, %c0_35] : memref<1x32xf32, #tpu.memory_space<vmem>>, vector<1x32xf32>
    %c0_36 = arith.constant 0 : index
    %c0_37 = arith.constant 0 : index
    %102 = vector.load %arg19[%c0_36, %c0_37] : memref<1x32xf32, #tpu.memory_space<vmem>>, vector<1x32xf32>
    %cst_38 = arith.constant dense<0.000000e+00> : vector<64xf32>
    %103 = vector.multi_reduction <add>, %100, %cst_38 [1] : vector<64x32xf32> to vector<64xf32>
    %104 = vector.shape_cast %103 : vector<64xf32> to vector<64x1xf32>
    %cst_39 = arith.constant 3.200000e+01 : f32
    %105 = vector.broadcast %cst_39 : f32 to vector<64x1xf32>
    %106 = arith.divf %104, %105 : vector<64x1xf32>
    %107 = vector.broadcast %106 : vector<64x1xf32> to vector<64x32xf32>
    %108 = arith.subf %100, %107 : vector<64x32xf32>
    %109 = arith.mulf %108, %108 : vector<64x32xf32>
    %cst_40 = arith.constant dense<0.000000e+00> : vector<64xf32>
    %110 = vector.multi_reduction <add>, %109, %cst_40 [1] : vector<64x32xf32> to vector<64xf32>
    %111 = vector.shape_cast %110 : vector<64xf32> to vector<64x1xf32>
    %cst_41 = arith.constant 3.200000e+01 : f32
    %112 = vector.broadcast %cst_41 : f32 to vector<64x1xf32>
    %113 = arith.divf %111, %112 : vector<64x1xf32>
    %114 = vector.broadcast %106 : vector<64x1xf32> to vector<64x32xf32>
    %115 = arith.subf %100, %114 : vector<64x32xf32>
    %cst_42 = arith.constant 9.99999996E-13 : f32
    %116 = vector.broadcast %cst_42 : f32 to vector<64x1xf32>
    %117 = arith.addf %113, %116 : vector<64x1xf32>
    %118 = math.rsqrt %117 : vector<64x1xf32>
    %119 = vector.broadcast %118 : vector<64x1xf32> to vector<64x32xf32>
    %120 = arith.mulf %115, %119 : vector<64x32xf32>
    %121 = vector.broadcast %101 : vector<1x32xf32> to vector<64x32xf32>
    %122 = arith.mulf %120, %121 : vector<64x32xf32>
    %123 = vector.broadcast %102 : vector<1x32xf32> to vector<64x32xf32>
    %124 = arith.addf %122, %123 : vector<64x32xf32>
    %c0_43 = arith.constant 0 : index
    %c0_44 = arith.constant 0 : index
    %125 = vector.load %arg6[%c0_43, %c0_44] : memref<32x128xf32, #tpu.memory_space<vmem>>, vector<32x128xf32>
    %126 = arith.truncf %124 : vector<64x32xf32> to vector<64x32xbf16>
    %127 = arith.truncf %125 : vector<32x128xf32> to vector<32x128xbf16>
    %cst_45 = arith.constant dense<0.000000e+00> : vector<64x128xf32>
    %128 = tpu.matmul %126, %127, %cst_45 {dimension_numbers = #tpu.dot_dimension_numbers<[1], [0], [0], [1], [0, 0, 1, 1], [], []>} : vector<64x32xbf16>, vector<32x128xbf16>, vector<64x128xf32> -> vector<64x128xf32>
    %c0_46 = arith.constant 0 : index
    %c0_47 = arith.constant 0 : index
    %129 = vector.load %arg7[%c0_46, %c0_47] : memref<1x128xf32, #tpu.memory_space<vmem>>, vector<1x128xf32>
    %130 = vector.broadcast %129 : vector<1x128xf32> to vector<64x128xf32>
    %131 = arith.addf %128, %130 : vector<64x128xf32>
    %132 = arith.mulf %131, %131 : vector<64x128xf32>
    %133 = arith.mulf %131, %132 : vector<64x128xf32>
    %cst_48 = arith.constant 4.471500e-02 : f32
    %134 = vector.broadcast %cst_48 : f32 to vector<64x128xf32>
    %135 = arith.mulf %134, %133 : vector<64x128xf32>
    %136 = arith.addf %131, %135 : vector<64x128xf32>
    %cst_49 = arith.constant 0.797884583 : f32
    %137 = vector.broadcast %cst_49 : f32 to vector<64x128xf32>
    %138 = arith.mulf %137, %136 : vector<64x128xf32>
    %139 = math.tanh %138 : vector<64x128xf32>
    %cst_50 = arith.constant 1.000000e+00 : f32
    %140 = vector.broadcast %cst_50 : f32 to vector<64x128xf32>
    %141 = arith.addf %140, %139 : vector<64x128xf32>
    %cst_51 = arith.constant 5.000000e-01 : f32
    %142 = vector.broadcast %cst_51 : f32 to vector<64x128xf32>
    %143 = arith.mulf %142, %141 : vector<64x128xf32>
    %144 = arith.mulf %131, %143 : vector<64x128xf32>
    %c0_52 = arith.constant 0 : index
    %c0_53 = arith.constant 0 : index
    %145 = vector.load %arg8[%c0_52, %c0_53] : memref<128x32xf32, #tpu.memory_space<vmem>>, vector<128x32xf32>
    %146 = arith.truncf %144 : vector<64x128xf32> to vector<64x128xbf16>
    %147 = arith.truncf %145 : vector<128x32xf32> to vector<128x32xbf16>
    %cst_54 = arith.constant dense<0.000000e+00> : vector<64x32xf32>
    %148 = tpu.matmul %146, %147, %cst_54 {dimension_numbers = #tpu.dot_dimension_numbers<[1], [0], [0], [1], [0, 0, 1, 1], [], []>} : vector<64x128xbf16>, vector<128x32xbf16>, vector<64x32xf32> -> vector<64x32xf32>
    %c0_55 = arith.constant 0 : index
    %c0_56 = arith.constant 0 : index
    %149 = vector.load %arg9[%c0_55, %c0_56] : memref<1x32xf32, #tpu.memory_space<vmem>>, vector<1x32xf32>
    %150 = vector.broadcast %149 : vector<1x32xf32> to vector<64x32xf32>
    %151 = arith.addf %148, %150 : vector<64x32xf32>
    %152 = arith.addf %124, %151 : vector<64x32xf32>
    %c0_57 = arith.constant 0 : index
    %c0_58 = arith.constant 0 : index
    %153 = vector.load %arg20[%c0_57, %c0_58] : memref<1x32xf32, #tpu.memory_space<vmem>>, vector<1x32xf32>
    %c0_59 = arith.constant 0 : index
    %c0_60 = arith.constant 0 : index
    %154 = vector.load %arg21[%c0_59, %c0_60] : memref<1x32xf32, #tpu.memory_space<vmem>>, vector<1x32xf32>
    %cst_61 = arith.constant dense<0.000000e+00> : vector<64xf32>
    %155 = vector.multi_reduction <add>, %152, %cst_61 [1] : vector<64x32xf32> to vector<64xf32>
    %156 = vector.shape_cast %155 : vector<64xf32> to vector<64x1xf32>
    %cst_62 = arith.constant 3.200000e+01 : f32
    %157 = vector.broadcast %cst_62 : f32 to vector<64x1xf32>
    %158 = arith.divf %156, %157 : vector<64x1xf32>
    %159 = vector.broadcast %158 : vector<64x1xf32> to vector<64x32xf32>
    %160 = arith.subf %152, %159 : vector<64x32xf32>
    %161 = arith.mulf %160, %160 : vector<64x32xf32>
    %cst_63 = arith.constant dense<0.000000e+00> : vector<64xf32>
    %162 = vector.multi_reduction <add>, %161, %cst_63 [1] : vector<64x32xf32> to vector<64xf32>
    %163 = vector.shape_cast %162 : vector<64xf32> to vector<64x1xf32>
    %cst_64 = arith.constant 3.200000e+01 : f32
    %164 = vector.broadcast %cst_64 : f32 to vector<64x1xf32>
    %165 = arith.divf %163, %164 : vector<64x1xf32>
    %166 = vector.broadcast %158 : vector<64x1xf32> to vector<64x32xf32>
    %167 = arith.subf %152, %166 : vector<64x32xf32>
    %cst_65 = arith.constant 9.99999996E-13 : f32
    %168 = vector.broadcast %cst_65 : f32 to vector<64x1xf32>
    %169 = arith.addf %165, %168 : vector<64x1xf32>
    %170 = math.rsqrt %169 : vector<64x1xf32>
    %171 = vector.broadcast %170 : vector<64x1xf32> to vector<64x32xf32>
    %172 = arith.mulf %167, %171 : vector<64x32xf32>
    %173 = vector.broadcast %153 : vector<1x32xf32> to vector<64x32xf32>
    %174 = arith.mulf %172, %173 : vector<64x32xf32>
    %175 = vector.broadcast %154 : vector<1x32xf32> to vector<64x32xf32>
    %176 = arith.addf %174, %175 : vector<64x32xf32>
    %177 = vector.shape_cast %176 : vector<64x32xf32> to vector<8x8x32xf32>
    %178 = vector.extract_strided_slice %177 {offsets = [0, 0, 0], sizes = [8, 1, 32], strides = [1, 1, 1]} : vector<8x8x32xf32> to vector<8x1x32xf32>
    %179 = vector.shape_cast %178 : vector<8x1x32xf32> to vector<8x32xf32>
    %c0_66 = arith.constant 0 : index
    %c0_67 = arith.constant 0 : index
    %180 = vector.load %arg10[%c0_66, %c0_67] : memref<32x32xf32, #tpu.memory_space<vmem>>, vector<32x32xf32>
    %181 = arith.truncf %179 : vector<8x32xf32> to vector<8x32xbf16>
    %182 = arith.truncf %180 : vector<32x32xf32> to vector<32x32xbf16>
    %cst_68 = arith.constant dense<0.000000e+00> : vector<8x32xf32>
    %183 = tpu.matmul %181, %182, %cst_68 {dimension_numbers = #tpu.dot_dimension_numbers<[1], [0], [0], [1], [0, 0, 1, 1], [], []>} : vector<8x32xbf16>, vector<32x32xbf16>, vector<8x32xf32> -> vector<8x32xf32>
    %c0_69 = arith.constant 0 : index
    %c0_70 = arith.constant 0 : index
    %184 = vector.load %arg11[%c0_69, %c0_70] : memref<1x32xf32, #tpu.memory_space<vmem>>, vector<1x32xf32>
    %185 = vector.broadcast %184 : vector<1x32xf32> to vector<8x32xf32>
    %186 = arith.addf %183, %185 : vector<8x32xf32>
    %187 = math.tanh %186 : vector<8x32xf32>
    %c0_71 = arith.constant 0 : index
    %c0_72 = arith.constant 0 : index
    %188 = vector.load %arg24[%c0_71, %c0_72] : memref<8x32xf32, #tpu.memory_space<vmem>>, vector<8x32xf32>
    tpu.vector_store %arg24[%c0_71, %c0_72], %187 {strides = array<i32>} : memref<8x32xf32, #tpu.memory_space<vmem>>, vector<8x32xf32>,
    %c0_73 = arith.constant 0 : index
    %c0_74 = arith.constant 0 : index
    %189 = vector.load %arg12[%c0_73, %c0_74] : memref<32x32xf32, #tpu.memory_space<vmem>>, vector<32x32xf32>
    %190 = arith.truncf %187 : vector<8x32xf32> to vector<8x32xbf16>
    %191 = arith.truncf %189 : vector<32x32xf32> to vector<32x32xbf16>
    %cst_75 = arith.constant dense<0.000000e+00> : vector<8x32xf32>
    %192 = tpu.matmul %190, %191, %cst_75 {dimension_numbers = #tpu.dot_dimension_numbers<[1], [0], [0], [1], [0, 0, 1, 1], [], []>} : vector<8x32xbf16>, vector<32x32xbf16>, vector<8x32xf32> -> vector<8x32xf32>
    %c0_76 = arith.constant 0 : index
    %c0_77 = arith.constant 0 : index
    %193 = vector.load %arg13[%c0_76, %c0_77] : memref<1x32xf32, #tpu.memory_space<vmem>>, vector<1x32xf32>
    %194 = vector.broadcast %193 : vector<1x32xf32> to vector<8x32xf32>
    %195 = arith.addf %192, %194 : vector<8x32xf32>
    %cst_78 = arith.constant 0.000000e+00 : f32
    %196 = vector.broadcast %cst_78 : f32 to vector<8x32xf32>
    %197 = arith.cmpf oge, %195, %196 : vector<8x32xf32>
    %cst_79 = arith.constant 2.000000e-01 : f32
    %198 = vector.broadcast %cst_79 : f32 to vector<8x32xf32>
    %199 = arith.mulf %198, %195 : vector<8x32xf32>
    %200 = arith.select %197, %195, %199 : vector<8x32xi1>, vector<8x32xf32>
    %c0_80 = arith.constant 0 : index
    %c0_81 = arith.constant 0 : index
    %201 = vector.load %arg14[%c0_80, %c0_81] : memref<1x32xf32, #tpu.memory_space<vmem>>, vector<1x32xf32>
    %202 = arith.truncf %201 : vector<1x32xf32> to vector<1x32xbf16>
    %203 = arith.truncf %200 : vector<8x32xf32> to vector<8x32xbf16>
    %cst_82 = arith.constant dense<0.000000e+00> : vector<1x8xf32>
    %204 = tpu.matmul %202, %203, %cst_82 {dimension_numbers = #tpu.dot_dimension_numbers<[1], [1], [0], [0], [0, 0, 1, 0], [], []>} : vector<1x32xbf16>, vector<8x32xbf16>, vector<1x8xf32> -> vector<1x8xf32>
    %c0_83 = arith.constant 0 : index
    %c0_84 = arith.constant 0 : index
    %205 = vector.load %arg15[%c0_83, %c0_84] : memref<1x1xf32, #tpu.memory_space<vmem>>, vector<1x1xf32>
    %206 = vector.broadcast %205 : vector<1x1xf32> to vector<1x8xf32>
    %207 = arith.addf %204, %206 : vector<1x8xf32>
    %208 = math.tanh %207 : vector<1x8xf32>
    %c0_85 = arith.constant 0 : index
    %c0_86 = arith.constant 0 : index
    %209 = vector.load %arg23[%c0_85, %c0_86] : memref<1x8xf32, #tpu.memory_space<vmem>>, vector<1x8xf32>
    tpu.vector_store %arg23[%c0_85, %c0_86], %208 {strides = array<i32>} : memref<1x8xf32, #tpu.memory_space<vmem>>, vector<1x8xf32>,
    %210 = tpu.iota {dimensions = array<i32: 1>} : vector<1x8xi32>
    %cst_87 = arith.constant dense<0xFF800000> : vector<1xf32>
    %211 = vector.multi_reduction <maximumf>, %208, %cst_87 [1] : vector<1x8xf32> to vector<1xf32>
    %212 = vector.shape_cast %211 : vector<1xf32> to vector<1x1xf32>
    %213 = vector.broadcast %212 : vector<1x1xf32> to vector<1x8xf32>
    %214 = arith.cmpf oge, %208, %213 : vector<1x8xf32>
    %c8_i32 = arith.constant 8 : i32
    %215 = vector.broadcast %c8_i32 : i32 to vector<1x8xi32>
    %216 = arith.select %214, %210, %215 : vector<1x8xi1>, vector<1x8xi32>
    %cst_88 = arith.constant dense<2147483647> : vector<1xi32>
    %217 = vector.multi_reduction <minsi>, %216, %cst_88 [1] : vector<1x8xi32> to vector<1xi32>
    %218 = vector.shape_cast %217 : vector<1xi32> to vector<1x1xi32>
    %219 = vector.extract_strided_slice %208 {offsets = [0, 0], sizes = [1, 1], strides = [1, 1]} : vector<1x8xf32> to vector<1x1xf32>
    %220 = vector.broadcast %219 : vector<1x1xf32> to vector<1x8xf32>
    %221 = arith.subf %208, %220 : vector<1x8xf32>
    %cst_89 = arith.constant 1.000000e+00 : f32
    %222 = vector.broadcast %cst_89 : f32 to vector<1x8xf32>
    %223 = arith.addf %221, %222 : vector<1x8xf32>
    %cst_90 = arith.constant 0.000000e+00 : f32
    %224 = vector.broadcast %cst_90 : f32 to vector<1x8xf32>
    %225 = arith.maximumf %224, %223 : vector<1x8xf32>
    %c1_i32 = arith.constant 1 : i32
    %226 = vector.broadcast %c1_i32 : i32 to vector<1x8xi32>
    %227 = arith.cmpi sge, %210, %226 : vector<1x8xi32>
    %cst_91 = arith.constant 0.000000e+00 : f32
    %228 = vector.broadcast %cst_91 : f32 to vector<1x8xf32>
    %229 = arith.select %227, %225, %228 : vector<1x8xi1>, vector<1x8xf32>
    %cst_92 = arith.constant dense<0.000000e+00> : vector<1xf32>
    %230 = vector.multi_reduction <add>, %229, %cst_92 [1] : vector<1x8xf32> to vector<1xf32>
    %231 = vector.shape_cast %230 : vector<1xf32> to vector<1x1xf32>
    %cst_93 = arith.constant 7.000000e+00 : f32
    %232 = vector.broadcast %cst_93 : f32 to vector<1x1xf32>
    %233 = arith.divf %231, %232 : vector<1x1xf32>
    %234 = tpu.iota {dimensions = array<i32: 1>} : vector<1x128xi32>
    %c0_i32 = arith.constant 0 : i32
    %235 = vector.broadcast %c0_i32 : i32 to vector<1x128xi32>
    %236 = arith.cmpi eq, %234, %235 : vector<1x128xi32>
    %c1_i32_94 = arith.constant 1 : i32
    %237 = vector.broadcast %c1_i32_94 : i32 to vector<1x128xi32>
    %238 = arith.cmpi eq, %234, %237 : vector<1x128xi32>
    %c2_i32 = arith.constant 2 : i32
    %239 = vector.broadcast %c2_i32 : i32 to vector<1x128xi32>
    %240 = arith.cmpi eq, %234, %239 : vector<1x128xi32>
    %241 = arith.sitofp %218 : vector<1x1xi32> to vector<1x1xf32>
    %cst_95 = arith.constant 0.000000e+00 : f32
    %242 = vector.shape_cast %241 : vector<1x1xf32> to vector<1x1xf32>
    %243 = vector.broadcast %242 : vector<1x1xf32> to vector<1x128xf32>
    %244 = vector.broadcast %cst_95 : f32 to vector<1x128xf32>
    %245 = arith.select %240, %243, %244 : vector<1x128xi1>, vector<1x128xf32>
    %246 = vector.shape_cast %212 : vector<1x1xf32> to vector<1x1xf32>
    %247 = vector.broadcast %246 : vector<1x1xf32> to vector<1x128xf32>
    %248 = arith.select %238, %247, %245 : vector<1x128xi1>, vector<1x128xf32>
    %249 = vector.shape_cast %233 : vector<1x1xf32> to vector<1x1xf32>
    %250 = vector.broadcast %249 : vector<1x1xf32> to vector<1x128xf32>
    %251 = arith.select %236, %250, %248 : vector<1x128xi1>, vector<1x128xf32>
    %c0_96 = arith.constant 0 : index
    %c0_97 = arith.constant 0 : index
    %252 = vector.load %arg22[%c0_96, %c0_97] : memref<1x128xf32, #tpu.memory_space<vmem>>, vector<1x128xf32>
    tpu.vector_store %arg22[%c0_96, %c0_97], %251 {strides = array<i32>} : memref<1x128xf32, #tpu.memory_space<vmem>>, vector<1x128xf32>,
    return
  }
}

</mosaic_0001>

<llo_original>
// kernel: bert_ranker_forward.1
$region0: #{bert_ranker_forward.1}
  #allocation0 [shape = 'u32[]', space=smem, size = 0x4, offset = 0x4, fixed_abs, tag = 'smem constant byte address 0x4 - core index']
  #allocation1 [shape = 'u32[72,128]{1,0:T(1,128)}', space=vmem, size = 0x9000, scoped, tag = 'internal scratch']
  #allocation2 [shape = 'f32[1,1]{1,0:T(1,128)S(1)}', space=vmem, size = 0x200, scoped, tag = 'scoped memory for bert_ranker_forward.1']
  %s0 = inlined_call_operand.vmem [shape: f32[64,32], index: 0, kind: input, shape index: {}]
  %s1 = inlined_call_operand.vmem [shape: f32[8,1,8], index: 1, kind: input, shape index: {}]
  %s2 = inlined_call_operand.vmem [shape: f32[32,96], index: 2, kind: input, shape index: {}]
  %s3 = inlined_call_operand.vmem [shape: f32[1,96], index: 3, kind: input, shape index: {}]
  %s4 = inlined_call_operand.vmem [shape: f32[32,32], index: 4, kind: input, shape index: {}]
  %s5 = inlined_call_operand.vmem [shape: f32[1,32], index: 5, kind: input, shape index: {}]
  %s6 = inlined_call_operand.vmem [shape: f32[32,128], index: 6, kind: input, shape index: {}]
  %s7 = inlined_call_operand.vmem [shape: f32[1,128], index: 7, kind: input, shape index: {}]
  %s8 = inlined_call_operand.vmem [shape: f32[128,32], index: 8, kind: input, shape index: {}]
  %s9 = inlined_call_operand.vmem [shape: f32[1,32], index: 9, kind: input, shape index: {}]
  %s10 = inlined_call_operand.vmem [shape: f32[32,32], index: 10, kind: input, shape index: {}]
  %s11 = inlined_call_operand.vmem [shape: f32[1,32], index: 11, kind: input, shape index: {}]
  %s12 = inlined_call_operand.vmem [shape: f32[32,32], index: 12, kind: input, shape index: {}]
  %s13 = inlined_call_operand.vmem [shape: f32[1,32], index: 13, kind: input, shape index: {}]
  %s14 = inlined_call_operand.vmem [shape: f32[1,32], index: 14, kind: input, shape index: {}]
  %s15 = inlined_call_operand.<no memory space> [shape: f32[1,1], index: 15, kind: input, shape index: {}]
  %s16 = inlined_call_operand.vmem [shape: f32[1,32], index: 16, kind: input, shape index: {}]
  %s17 = inlined_call_operand.vmem [shape: f32[1,32], index: 17, kind: input, shape index: {}]
  %s18 = inlined_call_operand.vmem [shape: f32[1,32], index: 18, kind: input, shape index: {}]
  %s19 = inlined_call_operand.vmem [shape: f32[1,32], index: 19, kind: input, shape index: {}]
  %s20 = inlined_call_operand.vmem [shape: f32[1,32], index: 20, kind: input, shape index: {}]
  %s21 = inlined_call_operand.vmem [shape: f32[1,32], index: 21, kind: input, shape index: {}]
  %s22 = inlined_call_operand.vmem [shape: f32[1,128], index: 22, kind: output, shape index: {0}]
  %s23 = inlined_call_operand.hbm [shape: f32[1,8], index: 23, kind: output, shape index: {1}]
  %s24 = inlined_call_operand.hbm [shape: f32[8,32], index: 24, kind: output, shape index: {2}]
  %25 = xla_tuple %s22, %s23, %s24
  %s26 = sld [smem:[#allocation0]]
  $region114: #{bert_ranker_forward.1} parent=0
    _
  %s28 = ssub.s32 1, %s26
  %s29 = scalar_select 0, %s28, %s26
  %v30 = vstv %s15
  %31 = vst [vmem:[#allocation2] sm:$0x1] %v30
  $region1: #{bert_ranker_forward.1} parent=0
    #allocation3 [shape = 'u8[512]{0}', space=vmem, size = 0x400, scoped, tag = 'output window, operand 1, single buffered']
    #allocation4 [shape = 's32[1]{0}', space=sflag, size = 0x4, scoped, tag = 'scoped memory for bert_ranker_forward.1']
    #allocation5 [shape = 'u8[4096]{0}', space=vmem, size = 0x1000, scoped, tag = 'output window, operand 2, single buffered']
    #allocation6 [shape = 's32[1]{0}', space=sflag, size = 0x4, scoped, tag = 'scoped memory for bert_ranker_forward.1']
    %32 = vsyncpa [#allocation4], 0
    %33 = vsyncpa [#allocation6], 0
    // Predicated region
    $region2: #{bert_ranker_forward.1} parent=1 // pred_check
      _
    $region3: #{bert_ranker_forward.1} parent=1 // pred_check_branch
      %35 = sbr.rel (0) target = $region5
    $region4: #{bert_ranker_forward.1} parent=1 // pred_region
      _
    $region5: #{bert_ranker_forward.1} parent=1 // pred_fallthru
      _
    // Predicated region
    $region6: #{bert_ranker_forward.1} parent=1 // pred_check
      _
    $region7: #{bert_ranker_forward.1} parent=1 // pred_check_branch
      %37 = sbr.rel (0) target = $region9
    $region8: #{bert_ranker_forward.1} parent=1 // pred_region
      _
    $region9: #{bert_ranker_forward.1} parent=1 // pred_fallthru
      _
    // Predicated region
    $region10: #{bert_ranker_forward.1} parent=1 // pred_check
      _
    $region11: #{bert_ranker_forward.1} parent=1 // pred_check_branch
      %39 = sbr.rel (0) target = $region13
    $region12: #{bert_ranker_forward.1} parent=1 // pred_region
      _
    $region13: #{bert_ranker_forward.1} parent=1 // pred_fallthru
      _
    // Predicated region
    $region14: #{bert_ranker_forward.1} parent=1 // pred_check
      _
    $region15: #{bert_ranker_forward.1} parent=1 // pred_check_branch
      %41 = sbr.rel (0) target = $region17
    $region16: #{bert_ranker_forward.1} parent=1 // pred_region
      _
    $region17: #{bert_ranker_forward.1} parent=1 // pred_fallthru
      _
    // Predicated region
    $region18: #{bert_ranker_forward.1} parent=1 // pred_check
      _
    $region19: #{bert_ranker_forward.1} parent=1 // pred_check_branch
      %43 = sbr.rel (0) target = $region21
    $region20: #{bert_ranker_forward.1} parent=1 // pred_region
      _
    $region21: #{bert_ranker_forward.1} parent=1 // pred_fallthru
      _
    // Predicated region
    $region22: #{bert_ranker_forward.1} parent=1 // pred_check
      _
    $region23: #{bert_ranker_forward.1} parent=1 // pred_check_branch
      %45 = sbr.rel (0) target = $region25
    $region24: #{bert_ranker_forward.1} parent=1 // pred_region
      _
    $region25: #{bert_ranker_forward.1} parent=1 // pred_fallthru
      _
    // Predicated region
    $region26: #{bert_ranker_forward.1} parent=1 // pred_check
      _
    $region27: #{bert_ranker_forward.1} parent=1 // pred_check_branch
      %47 = sbr.rel (0) target = $region29
    $region28: #{bert_ranker_forward.1} parent=1 // pred_region
      _
    $region29: #{bert_ranker_forward.1} parent=1 // pred_fallthru
      _
    // Predicated region
    $region30: #{bert_ranker_forward.1} parent=1 // pred_check
      _
    $region31: #{bert_ranker_forward.1} parent=1 // pred_check_branch
      %49 = sbr.rel (0) target = $region33
    $region32: #{bert_ranker_forward.1} parent=1 // pred_region
      _
    $region33: #{bert_ranker_forward.1} parent=1 // pred_fallthru
      _
    // Predicated region
    $region34: #{bert_ranker_forward.1} parent=1 // pred_check
      _
    $region35: #{bert_ranker_forward.1} parent=1 // pred_check_branch
      %51 = sbr.rel (0) target = $region37
    $region36: #{bert_ranker_forward.1} parent=1 // pred_region
      _
    $region37: #{bert_ranker_forward.1} parent=1 // pred_fallthru
      _
    // Predicated region
    $region38: #{bert_ranker_forward.1} parent=1 // pred_check
      _
    $region39: #{bert_ranker_forward.1} parent=1 // pred_check_branch
      %53 = sbr.rel (0) target = $region41
    $region40: #{bert_ranker_forward.1} parent=1 // pred_region
      _
    $region41: #{bert_ranker_forward.1} parent=1 // pred_fallthru
      _
    // Predicated region
    $region42: #{bert_ranker_forward.1} parent=1 // pred_check
      _
    $region43: #{bert_ranker_forward.1} parent=1 // pred_check_branch
      %55 = sbr.rel (0) target = $region45
    $region44: #{bert_ranker_forward.1} parent=1 // pred_region
      _
    $region45: #{bert_ranker_forward.1} parent=1 // pred_fallthru
      _
    // Predicated region
    $region46: #{bert_ranker_forward.1} parent=1 // pred_check
      _
    $region47: #{bert_ranker_forward.1} parent=1 // pred_check_branch
      %57 = sbr.rel (0) target = $region49
    $region48: #{bert_ranker_forward.1} parent=1 // pred_region
      _
    $region49: #{bert_ranker_forward.1} parent=1 // pred_fallthru
      _
    // Predicated region
    $region50: #{bert_ranker_forward.1} parent=1 // pred_check
      _
    $region51: #{bert_ranker_forward.1} parent=1 // pred_check_branch
      %59 = sbr.rel (0) target = $region53
    $region52: #{bert_ranker_forward.1} parent=1 // pred_region
      _
    $region53: #{bert_ranker_forward.1} parent=1 // pred_fallthru
      _
    // Predicated region
    $region54: #{bert_ranker_forward.1} parent=1 // pred_check
      _
    $region55: #{bert_ranker_forward.1} parent=1 // pred_check_branch
      %61 = sbr.rel (0) target = $region57
    $region56: #{bert_ranker_forward.1} parent=1 // pred_region
      _
    $region57: #{bert_ranker_forward.1} parent=1 // pred_fallthru
      _
    // Predicated region
    $region58: #{bert_ranker_forward.1} parent=1 // pred_check
      _
    $region59: #{bert_ranker_forward.1} parent=1 // pred_check_branch
      %63 = sbr.rel (0) target = $region61
    $region60: #{bert_ranker_forward.1} parent=1 // pred_region
      _
    $region61: #{bert_ranker_forward.1} parent=1 // pred_fallthru
      _
    // Predicated region
    $region62: #{bert_ranker_forward.1} parent=1 // pred_check
      _
    $region63: #{bert_ranker_forward.1} parent=1 // pred_check_branch
      %65 = sbr.rel (0) target = $region65
    $region64: #{bert_ranker_forward.1} parent=1 // pred_region
      _
    $region65: #{bert_ranker_forward.1} parent=1 // pred_fallthru
      _
    // Predicated region
    $region66: #{bert_ranker_forward.1} parent=1 // pred_check
      _
    $region67: #{bert_ranker_forward.1} parent=1 // pred_check_branch
      %67 = sbr.rel (0) target = $region69
    $region68: #{bert_ranker_forward.1} parent=1 // pred_region
      _
    $region69: #{bert_ranker_forward.1} parent=1 // pred_fallthru
      _
    // Predicated region
    $region70: #{bert_ranker_forward.1} parent=1 // pred_check
      _
    $region71: #{bert_ranker_forward.1} parent=1 // pred_check_branch
      %69 = sbr.rel (0) target = $region73
    $region72: #{bert_ranker_forward.1} parent=1 // pred_region
      _
    $region73: #{bert_ranker_forward.1} parent=1 // pred_fallthru
      _
    // Predicated region
    $region74: #{bert_ranker_forward.1} parent=1 // pred_check
      _
    $region75: #{bert_ranker_forward.1} parent=1 // pred_check_branch
      %71 = sbr.rel (0) target = $region77
    $region76: #{bert_ranker_forward.1} parent=1 // pred_region
      _
    $region77: #{bert_ranker_forward.1} parent=1 // pred_fallthru
      _
    // Predicated region
    $region78: #{bert_ranker_forward.1} parent=1 // pred_check
      _
    $region79: #{bert_ranker_forward.1} parent=1 // pred_check_branch
      %73 = sbr.rel (0) target = $region81
    $region80: #{bert_ranker_forward.1} parent=1 // pred_region
      _
    $region81: #{bert_ranker_forward.1} parent=1 // pred_fallthru
      _
    // Predicated region
    $region82: #{bert_ranker_forward.1} parent=1 // pred_check
      _
    $region83: #{bert_ranker_forward.1} parent=1 // pred_check_branch
      %75 = sbr.rel (0) target = $region85
    $region84: #{bert_ranker_forward.1} parent=1 // pred_region
      _
    $region85: #{bert_ranker_forward.1} parent=1 // pred_fallthru
      _
    // Predicated region
    $region86: #{bert_ranker_forward.1} parent=1 // pred_check
      _
    $region87: #{bert_ranker_forward.1} parent=1 // pred_check_branch
      %77 = sbr.rel (0) target = $region89
    $region88: #{bert_ranker_forward.1} parent=1 // pred_region
      _
    $region89: #{bert_ranker_forward.1} parent=1 // pred_fallthru
      _
    %v79 = vld [vmem:[%s0] sm:$0xff]
    %v80 = vld [vmem:[%s0 + $0x8] sm:$0xff]
    %v81 = vld [vmem:[%s0 + $0x10] sm:$0xff]
    %v82 = vld [vmem:[%s0 + $0x18] sm:$0xff]
    %v83 = vld [vmem:[%s0 + $0x20] sm:$0xff]
    %v84 = vld [vmem:[%s0 + $0x28] sm:$0xff]
    %v85 = vld [vmem:[%s0 + $0x30] sm:$0xff]
    %v86 = vld [vmem:[%s0 + $0x38] sm:$0xff]
    %v87 = vld [vmem:[%s16] sm:$0x1]
    %v88 = vld [vmem:[%s17] sm:$0x1]
    %vm89 = vcmask 261120
    %v90 = vsel %vm89, %v79, 0.0
    %91 = vadd.xlane.f32.xlu0 %v90
    %v92 = vpop.xlane.xlu0 %91
    %v93 = vsel %vm89, %v80, 0.0
    %94 = vadd.xlane.f32.xlu0 %v93
    %v95 = vpop.xlane.xlu0 %94
    %v96 = vsel %vm89, %v81, 0.0
    %97 = vadd.xlane.f32.xlu0 %v96
    %v98 = vpop.xlane.xlu0 %97
    %v99 = vsel %vm89, %v82, 0.0
    %100 = vadd.xlane.f32.xlu0 %v99
    %v101 = vpop.xlane.xlu0 %100
    %v102 = vsel %vm89, %v83, 0.0
    %103 = vadd.xlane.f32.xlu0 %v102
    %v104 = vpop.xlane.xlu0 %103
    %v105 = vsel %vm89, %v84, 0.0
    %106 = vadd.xlane.f32.xlu0 %v105
    %v107 = vpop.xlane.xlu0 %106
    %v108 = vsel %vm89, %v85, 0.0
    %109 = vadd.xlane.f32.xlu0 %v108
    %v110 = vpop.xlane.xlu0 %109
    %v111 = vsel %vm89, %v86, 0.0
    %112 = vadd.xlane.f32.xlu0 %v111
    %v113 = vpop.xlane.xlu0 %112
    %v114 = vrcp.pop 32.0
    %v115 = vmul.f32 32.0, %v114
    %v116 = vsub.f32 1.0, %v115
    %v117 = vmul.f32 %v114, %v116
    %v118 = vadd.f32 %v114, %v117
    %vm119 = vweird.f32 %v114
    %v120 = vsel %vm119, %v114, %v118
    %v121 = vmul.f32 %v92, %v120
    %v122 = vmul.f32 %v95, %v120
    %v123 = vmul.f32 %v98, %v120
    %v124 = vmul.f32 %v101, %v120
    %v125 = vmul.f32 %v104, %v120
    %v126 = vmul.f32 %v107, %v120
    %v127 = vmul.f32 %v110, %v120
    %v128 = vmul.f32 %v113, %v120
    %v129 = vsub.f32 %v79, %v121
    %v130 = vsub.f32 %v80, %v122
    %v131 = vsub.f32 %v81, %v123
    %v132 = vsub.f32 %v82, %v124
    %v133 = vsub.f32 %v83, %v125
    %v134 = vsub.f32 %v84, %v126
    %v135 = vsub.f32 %v85, %v127
    %v136 = vsub.f32 %v86, %v128
    %v137 = vmul.f32 %v129, %v129
    %v138 = vmul.f32 %v130, %v130
    %v139 = vmul.f32 %v131, %v131
    %v140 = vmul.f32 %v132, %v132
    %v141 = vmul.f32 %v133, %v133
    %v142 = vmul.f32 %v134, %v134
    %v143 = vmul.f32 %v135, %v135
    %v144 = vmul.f32 %v136, %v136
    %v145 = vsel %vm89, %v137, 0.0
    %146 = vadd.xlane.f32.xlu0 %v145
    %v147 = vpop.xlane.xlu0 %146
    %v148 = vsel %vm89, %v138, 0.0
    %149 = vadd.xlane.f32.xlu0 %v148
    %v150 = vpop.xlane.xlu0 %149
    %v151 = vsel %vm89, %v139, 0.0
    %152 = vadd.xlane.f32.xlu0 %v151
    %v153 = vpop.xlane.xlu0 %152
    %v154 = vsel %vm89, %v140, 0.0
    %155 = vadd.xlane.f32.xlu0 %v154
    %v156 = vpop.xlane.xlu0 %155
    %v157 = vsel %vm89, %v141, 0.0
    %158 = vadd.xlane.f32.xlu0 %v157
    %v159 = vpop.xlane.xlu0 %158
    %v160 = vsel %vm89, %v142, 0.0
    %161 = vadd.xlane.f32.xlu0 %v160
    %v162 = vpop.xlane.xlu0 %161
    %v163 = vsel %vm89, %v143, 0.0
    %164 = vadd.xlane.f32.xlu0 %v163
    %v165 = vpop.xlane.xlu0 %164
    %v166 = vsel %vm89, %v144, 0.0
    %167 = vadd.xlane.f32.xlu0 %v166
    %v168 = vpop.xlane.xlu0 %167
    %v169 = vmul.f32 %v147, %v120
    %v170 = vmul.f32 %v150, %v120
    %v171 = vmul.f32 %v153, %v120
    %v172 = vmul.f32 %v156, %v120
    %v173 = vmul.f32 %v159, %v120
    %v174 = vmul.f32 %v162, %v120
    %v175 = vmul.f32 %v165, %v120
    %v176 = vmul.f32 %v168, %v120
    %v177 = vadd.f32 %v169, 1e-12
    %v178 = vadd.f32 %v170, 1e-12
    %v179 = vadd.f32 %v171, 1e-12
    %v180 = vadd.f32 %v172, 1e-12
    %v181 = vadd.f32 %v173, 1e-12
    %v182 = vadd.f32 %v174, 1e-12
    %v183 = vadd.f32 %v175, 1e-12
    %v184 = vadd.f32 %v176, 1e-12
    %v185 = vrsqrt.pop %v177
    %v186 = vmul.f32 %v185, %v177
    %v187 = vmul.f32 %v186, %v185
    %v188 = vmul.f32 0.5, %v187
    %v189 = vsub.f32 1.5, %v188
    %v190 = vmul.f32 %v185, %v189
    %vm191 = vweird.f32 %v177
    %vm192 = vweird.f32 %v185
    %vm193 = vmor %vm191, %vm192
    %v194 = vsel %vm193, %v185, %v190
    %v195 = vrsqrt.pop %v178
    %v196 = vmul.f32 %v195, %v178
    %v197 = vmul.f32 %v196, %v195
    %v198 = vmul.f32 0.5, %v197
    %v199 = vsub.f32 1.5, %v198
    %v200 = vmul.f32 %v195, %v199
    %vm201 = vweird.f32 %v178
    %vm202 = vweird.f32 %v195
    %vm203 = vmor %vm201, %vm202
    %v204 = vsel %vm203, %v195, %v200
    %v205 = vrsqrt.pop %v179
    %v206 = vmul.f32 %v205, %v179
    %v207 = vmul.f32 %v206, %v205
    %v208 = vmul.f32 0.5, %v207
    %v209 = vsub.f32 1.5, %v208
    %v210 = vmul.f32 %v205, %v209
    %vm211 = vweird.f32 %v179
    %vm212 = vweird.f32 %v205
    %vm213 = vmor %vm211, %vm212
    %v214 = vsel %vm213, %v205, %v210
    %v215 = vrsqrt.pop %v180
    %v216 = vmul.f32 %v215, %v180
    %v217 = vmul.f32 %v216, %v215
    %v218 = vmul.f32 0.5, %v217
    %v219 = vsub.f32 1.5, %v218
    %v220 = vmul.f32 %v215, %v219
    %vm221 = vweird.f32 %v180
    %vm222 = vweird.f32 %v215
    %vm223 = vmor %vm221, %vm222
    %v224 = vsel %vm223, %v215, %v220
    %v225 = vrsqrt.pop %v181
    %v226 = vmul.f32 %v225, %v181
    %v227 = vmul.f32 %v226, %v225
    %v228 = vmul.f32 0.5, %v227
    %v229 = vsub.f32 1.5, %v228
    %v230 = vmul.f32 %v225, %v229
    %vm231 = vweird.f32 %v181
    %vm232 = vweird.f32 %v225
    %vm233 = vmor %vm231, %vm232
    %v234 = vsel %vm233, %v225, %v230
    %v235 = vrsqrt.pop %v182
    %v236 = vmul.f32 %v235, %v182
    %v237 = vmul.f32 %v236, %v235
    %v238 = vmul.f32 0.5, %v237
    %v239 = vsub.f32 1.5, %v238
    %v240 = vmul.f32 %v235, %v239
    %vm241 = vweird.f32 %v182
    %vm242 = vweird.f32 %v235
    %vm243 = vmor %vm241, %vm242
    %v244 = vsel %vm243, %v235, %v240
    %v245 = vrsqrt.pop %v183
    %v246 = vmul.f32 %v245, %v183
    %v247 = vmul.f32 %v246, %v245
    %v248 = vmul.f32 0.5, %v247
    %v249 = vsub.f32 1.5, %v248
    %v250 = vmul.f32 %v245, %v249
    %vm251 = vweird.f32 %v183
    %vm252 = vweird.f32 %v245
    %vm253 = vmor %vm251, %vm252
    %v254 = vsel %vm253, %v245, %v250
    %v255 = vrsqrt.pop %v184
    %v256 = vmul.f32 %v255, %v184
    %v257 = vmul.f32 %v256, %v255
    %v258 = vmul.f32 0.5, %v257
    %v259 = vsub.f32 1.5, %v258
    %v260 = vmul.f32 %v255, %v259
    %vm261 = vweird.f32 %v184
    %vm262 = vweird.f32 %v255
    %vm263 = vmor %vm261, %vm262
    %v264 = vsel %vm263, %v255, %v260
    %v265 = vmul.f32 %v129, %v194
    %v266 = vmul.f32 %v130, %v204
    %v267 = vmul.f32 %v131, %v214
    %v268 = vmul.f32 %v132, %v224
    %v269 = vmul.f32 %v133, %v234
    %v270 = vmul.f32 %v134, %v244
    %v271 = vmul.f32 %v135, %v254
    %v272 = vmul.f32 %v136, %v264
    %v274 = vperm.slane %v87, 0
    %v276 = vmul.f32 %v265, %v274
    %v277 = vmul.f32 %v266, %v274
    %v278 = vmul.f32 %v267, %v274
    %v279 = vmul.f32 %v268, %v274
    %v280 = vmul.f32 %v269, %v274
    %v281 = vmul.f32 %v270, %v274
    %v282 = vmul.f32 %v271, %v274
    %v283 = vmul.f32 %v272, %v274
    %v285 = vperm.slane %v88, 0
    %v287 = vadd.f32 %v276, %v285
    %v288 = vadd.f32 %v277, %v285
    %v289 = vadd.f32 %v278, %v285
    %v290 = vadd.f32 %v279, %v285
    %v291 = vadd.f32 %v280, %v285
    %v292 = vadd.f32 %v281, %v285
    %v293 = vadd.f32 %v282, %v285
    %v294 = vadd.f32 %v283, %v285
    %v295 = vld [vmem:[%s2] sm:$0xff]
    %v296 = vld [vmem:[%s2 + $0x8] sm:$0xff]
    %v297 = vld [vmem:[%s2 + $0x10] sm:$0xff]
    %v298 = vld [vmem:[%s2 + $0x18] sm:$0xff]
    %v299 = vpack.c.bf16 %v288, %v287
    %v300 = vpack.c.bf16 %v290, %v289
    %v301 = vpack.c.bf16 %v292, %v291
    %v302 = vpack.c.bf16 %v294, %v293
    %v303 = vpack.c.bf16 %v296, %v295
    %v304 = vpack.c.bf16 %v298, %v297
    %v305 = vld [vmem:[%s3] sm:$0x1]
    %v307 = vperm.slane %v305, 0
    %v310 = vsel %vm89, %v299, 0
    %v313 = vsel %vm89, %v300, 0
    %v316 = vsel %vm89, %v301, 0
    %v319 = vsel %vm89, %v302, 0
    %321 = vmatpush.bf16.msra.mxu0 0
    %322 = vmatpush.bf16.msra.mxu0 0
    %323 = vmatpush.bf16.msra.mxu0 0
    %324 = vmatpush.bf16.msra.mxu0 0
    %325 = vmatpush.bf16.msra.mxu0 0
    %326 = vmatpush.bf16.msra.mxu0 0
    %327 = vmatpush.bf16.msra.mxu0 %v304
    %328 = vmatpush.bf16.msra.mxu0 %v303
    %329 = vmatmul.bf16.gmra.mxu0 %v310
    %v330 = vpop.f32.mrf.mxu0
    %v331 = vadd.f32 %v307, %v330
    %v332 = vpop.f32.mrf.mxu0
    %v333 = vadd.f32 %v307, %v332
    %334 = vmatmul.bf16.gmra.mxu0 %v313
    %v335 = vpop.f32.mrf.mxu0
    %v336 = vadd.f32 %v307, %v335
    %v337 = vpop.f32.mrf.mxu0
    %v338 = vadd.f32 %v307, %v337
    %339 = vmatmul.bf16.gmra.mxu0 %v316
    %v340 = vpop.f32.mrf.mxu0
    %v341 = vadd.f32 %v307, %v340
    %v342 = vpop.f32.mrf.mxu0
    %v343 = vadd.f32 %v307, %v342
    %344 = vmatmul.bf16.gmra.mxu0 %v319
    %v345 = vpop.f32.mrf.mxu0
    %v346 = vadd.f32 %v307, %v345
    %v347 = vpop.f32.mrf.mxu0
    %v348 = vadd.f32 %v307, %v347
    %349 = vdwg.mxu0
    %v350 = vld [vmem:[%s1] sm:$0x1]
    %v351 = vld [vmem:[%s1 + $0x1] sm:$0x1]
    %v352 = vld [vmem:[%s1 + $0x2] sm:$0x1]
    %v353 = vld [vmem:[%s1 + $0x3] sm:$0x1]
    %v354 = vld [vmem:[%s1 + $0x4] sm:$0x1]
    %v355 = vld [vmem:[%s1 + $0x5] sm:$0x1]
    %v356 = vld [vmem:[%s1 + $0x6] sm:$0x1]
    %v357 = vld [vmem:[%s1 + $0x7] sm:$0x1]
    %v358 = vld [vmem:[%s4] sm:$0xff]
    %v359 = vld [vmem:[%s4 + $0x8] sm:$0xff]
    %v360 = vld [vmem:[%s4 + $0x10] sm:$0xff]
    %v361 = vld [vmem:[%s4 + $0x18] sm:$0xff]
    %v362 = vpack.c.bf16 %v331, %v331
    %v363 = vpack.c.bf16 %v333, %v333
    %v364 = vpack.c.bf16 %v336, %v336
    %v365 = vpack.c.bf16 %v338, %v338
    %v366 = vpack.c.bf16 %v341, %v341
    %v367 = vpack.c.bf16 %v343, %v343
    %v368 = vpack.c.bf16 %v346, %v346
    %v369 = vpack.c.bf16 %v348, %v348
    %v371 = vunpack.c.l.b16 %v362
    %v372 = vpack.c.b16 %v371, %v371
    %373 = vrot.lane.b32.xlu0 %v372, 96
    %v374 = vpop.permute.xlu0 %373
    %vm375 = vcmask 130048
    %v377 = vsel %vm375, %v362, 0
    %v380 = vsel %vm375, %v374, 0
    %382 = vmatpush.bf16.xpose.msra.mxu0 0
    %383 = vmatpush.bf16.xpose.msra.mxu0 0
    %384 = vmatpush.bf16.xpose.msra.mxu0 0
    %385 = vmatpush.bf16.xpose.msra.mxu0 0
    %386 = vmatpush.bf16.xpose.msra.mxu0 0
    %387 = vmatpush.bf16.xpose.msra.mxu0 0
    %388 = vmatpush.bf16.xpose.msra.mxu0 0
    %389 = vmatpush.bf16.xpose.msra.mxu0 %v380
    %390 = vmatmul.bf16.gmra.mxu0 %v377
    %v391 = vpop.f32.mrf.mxu0
    %v392 = vadd.f32 0.0, %v391
    %v393 = vpop.f32.mrf.mxu0
    %394 = vdwg.mxu0
    %v396 = vunpack.c.l.b16 %v363
    %v397 = vpack.c.b16 %v396, %v396
    %398 = vrot.lane.b32.xlu0 %v397, 96
    %v399 = vpop.permute.xlu0 %398
    %v401 = vsel %vm375, %v363, 0
    %v404 = vsel %vm375, %v399, 0
    %406 = vmatpush.bf16.xpose.msra.mxu0 0
    %407 = vmatpush.bf16.xpose.msra.mxu0 0
    %408 = vmatpush.bf16.xpose.msra.mxu0 0
    %409 = vmatpush.bf16.xpose.msra.mxu0 0
    %410 = vmatpush.bf16.xpose.msra.mxu0 0
    %411 = vmatpush.bf16.xpose.msra.mxu0 0
    %412 = vmatpush.bf16.xpose.msra.mxu0 0
    %413 = vmatpush.bf16.xpose.msra.mxu0 %v404
    %414 = vmatmul.bf16.gmra.mxu0 %v401
    %v415 = vpop.f32.mrf.mxu0
    %v416 = vadd.f32 0.0, %v415
    %v417 = vpop.f32.mrf.mxu0
    %418 = vdwg.mxu0
    %v420 = vunpack.c.l.b16 %v364
    %v421 = vpack.c.b16 %v420, %v420
    %422 = vrot.lane.b32.xlu0 %v421, 96
    %v423 = vpop.permute.xlu0 %422
    %v425 = vsel %vm375, %v364, 0
    %v428 = vsel %vm375, %v423, 0
    %430 = vmatpush.bf16.xpose.msra.mxu0 0
    %431 = vmatpush.bf16.xpose.msra.mxu0 0
    %432 = vmatpush.bf16.xpose.msra.mxu0 0
    %433 = vmatpush.bf16.xpose.msra.mxu0 0
    %434 = vmatpush.bf16.xpose.msra.mxu0 0
    %435 = vmatpush.bf16.xpose.msra.mxu0 0
    %436 = vmatpush.bf16.xpose.msra.mxu0 0
    %437 = vmatpush.bf16.xpose.msra.mxu0 %v428
    %438 = vmatmul.bf16.gmra.mxu0 %v425
    %v439 = vpop.f32.mrf.mxu0
    %v440 = vadd.f32 0.0, %v439
    %v441 = vpop.f32.mrf.mxu0
    %442 = vdwg.mxu0
    %v444 = vunpack.c.l.b16 %v365
    %v445 = vpack.c.b16 %v444, %v444
    %446 = vrot.lane.b32.xlu0 %v445, 96
    %v447 = vpop.permute.xlu0 %446
    %v449 = vsel %vm375, %v365, 0
    %v452 = vsel %vm375, %v447, 0
    %454 = vmatpush.bf16.xpose.msra.mxu0 0
    %455 = vmatpush.bf16.xpose.msra.mxu0 0
    %456 = vmatpush.bf16.xpose.msra.mxu0 0
    %457 = vmatpush.bf16.xpose.msra.mxu0 0
    %458 = vmatpush.bf16.xpose.msra.mxu0 0
    %459 = vmatpush.bf16.xpose.msra.mxu0 0
    %460 = vmatpush.bf16.xpose.msra.mxu0 0
    %461 = vmatpush.bf16.xpose.msra.mxu0 %v452
    %462 = vmatmul.bf16.gmra.mxu0 %v449
    %v463 = vpop.f32.mrf.mxu0
    %v464 = vadd.f32 0.0, %v463
    %v465 = vpop.f32.mrf.mxu0
    %466 = vdwg.mxu0
    %v468 = vunpack.c.l.b16 %v366
    %v469 = vpack.c.b16 %v468, %v468
    %470 = vrot.lane.b32.xlu0 %v469, 96
    %v471 = vpop.permute.xlu0 %470
    %v473 = vsel %vm375, %v366, 0
    %v476 = vsel %vm375, %v471, 0
    %478 = vmatpush.bf16.xpose.msra.mxu0 0
    %479 = vmatpush.bf16.xpose.msra.mxu0 0
    %480 = vmatpush.bf16.xpose.msra.mxu0 0
    %481 = vmatpush.bf16.xpose.msra.mxu0 0
    %482 = vmatpush.bf16.xpose.msra.mxu0 0
    %483 = vmatpush.bf16.xpose.msra.mxu0 0
    %484 = vmatpush.bf16.xpose.msra.mxu0 0
    %485 = vmatpush.bf16.xpose.msra.mxu0 %v476
    %486 = vmatmul.bf16.gmra.mxu0 %v473
    %v487 = vpop.f32.mrf.mxu0
    %v488 = vadd.f32 0.0, %v487
    %v489 = vpop.f32.mrf.mxu0
    %490 = vdwg.mxu0
    %v492 = vunpack.c.l.b16 %v367
    %v493 = vpack.c.b16 %v492, %v492
    %494 = vrot.lane.b32.xlu0 %v493, 96
    %v495 = vpop.permute.xlu0 %494
    %v497 = vsel %vm375, %v367, 0
    %v500 = vsel %vm375, %v495, 0
    %502 = vmatpush.bf16.xpose.msra.mxu0 0
    %503 = vmatpush.bf16.xpose.msra.mxu0 0
    %504 = vmatpush.bf16.xpose.msra.mxu0 0
    %505 = vmatpush.bf16.xpose.msra.mxu0 0
    %506 = vmatpush.bf16.xpose.msra.mxu0 0
    %507 = vmatpush.bf16.xpose.msra.mxu0 0
    %508 = vmatpush.bf16.xpose.msra.mxu0 0
    %509 = vmatpush.bf16.xpose.msra.mxu0 %v500
    %510 = vmatmul.bf16.gmra.mxu0 %v497
    %v511 = vpop.f32.mrf.mxu0
    %v512 = vadd.f32 0.0, %v511
    %v513 = vpop.f32.mrf.mxu0
    %514 = vdwg.mxu0
    %v516 = vunpack.c.l.b16 %v368
    %v517 = vpack.c.b16 %v516, %v516
    %518 = vrot.lane.b32.xlu0 %v517, 96
    %v519 = vpop.permute.xlu0 %518
    %v521 = vsel %vm375, %v368, 0
    %v524 = vsel %vm375, %v519, 0
    %526 = vmatpush.bf16.xpose.msra.mxu0 0
    %527 = vmatpush.bf16.xpose.msra.mxu0 0
    %528 = vmatpush.bf16.xpose.msra.mxu0 0
    %529 = vmatpush.bf16.xpose.msra.mxu0 0
    %530 = vmatpush.bf16.xpose.msra.mxu0 0
    %531 = vmatpush.bf16.xpose.msra.mxu0 0
    %532 = vmatpush.bf16.xpose.msra.mxu0 0
    %533 = vmatpush.bf16.xpose.msra.mxu0 %v524
    %534 = vmatmul.bf16.gmra.mxu0 %v521
    %v535 = vpop.f32.mrf.mxu0
    %v536 = vadd.f32 0.0, %v535
    %v537 = vpop.f32.mrf.mxu0
    %538 = vdwg.mxu0
    %v540 = vunpack.c.l.b16 %v369
    %v541 = vpack.c.b16 %v540, %v540
    %542 = vrot.lane.b32.xlu0 %v541, 96
    %v543 = vpop.permute.xlu0 %542
    %v545 = vsel %vm375, %v369, 0
    %v548 = vsel %vm375, %v543, 0
    %550 = vmatpush.bf16.xpose.msra.mxu0 0
    %551 = vmatpush.bf16.xpose.msra.mxu0 0
    %552 = vmatpush.bf16.xpose.msra.mxu0 0
    %553 = vmatpush.bf16.xpose.msra.mxu0 0
    %554 = vmatpush.bf16.xpose.msra.mxu0 0
    %555 = vmatpush.bf16.xpose.msra.mxu0 0
    %556 = vmatpush.bf16.xpose.msra.mxu0 0
    %557 = vmatpush.bf16.xpose.msra.mxu0 %v548
    %558 = vmatmul.bf16.gmra.mxu0 %v545
    %v559 = vpop.f32.mrf.mxu0
    %v560 = vadd.f32 0.0, %v559
    %v561 = vpop.f32.mrf.mxu0
    %562 = vdwg.mxu0
    %v563 = vmul.f32 %v392, 0.25
    %v564 = vmul.f32 %v416, 0.25
    %v565 = vmul.f32 %v440, 0.25
    %v566 = vmul.f32 %v464, 0.25
    %v567 = vmul.f32 %v488, 0.25
    %v568 = vmul.f32 %v512, 0.25
    %v569 = vmul.f32 %v536, 0.25
    %v570 = vmul.f32 %v560, 0.25
    %v579 = vperm.slane %v350, 0
    %v580 = vperm.slane %v351, 0
    %v581 = vperm.slane %v352, 0
    %v582 = vperm.slane %v353, 0
    %v583 = vperm.slane %v354, 0
    %v584 = vperm.slane %v355, 0
    %v585 = vperm.slane %v356, 0
    %v586 = vperm.slane %v357, 0
    %v595 = vadd.f32 %v563, %v579
    %v596 = vadd.f32 %v564, %v580
    %v597 = vadd.f32 %v565, %v581
    %v598 = vadd.f32 %v566, %v582
    %v599 = vadd.f32 %v567, %v583
    %v600 = vadd.f32 %v568, %v584
    %v601 = vadd.f32 %v569, %v585
    %v602 = vadd.f32 %v570, %v586
    %vm603 = vcmask 64512
    %v604 = vsel %vm603, %v595, -inf
    %605 = vmax.xlane.f32.xlu0 %v604
    %v606 = vpop.xlane.xlu0 %605
    %v607 = vsel %vm603, %v596, -inf
    %608 = vmax.xlane.f32.xlu0 %v607
    %v609 = vpop.xlane.xlu0 %608
    %v610 = vsel %vm603, %v597, -inf
    %611 = vmax.xlane.f32.xlu0 %v610
    %v612 = vpop.xlane.xlu0 %611
    %v613 = vsel %vm603, %v598, -inf
    %614 = vmax.xlane.f32.xlu0 %v613
    %v615 = vpop.xlane.xlu0 %614
    %v616 = vsel %vm603, %v599, -inf
    %617 = vmax.xlane.f32.xlu0 %v616
    %v618 = vpop.xlane.xlu0 %617
    %v619 = vsel %vm603, %v600, -inf
    %620 = vmax.xlane.f32.xlu0 %v619
    %v621 = vpop.xlane.xlu0 %620
    %v622 = vsel %vm603, %v601, -inf
    %623 = vmax.xlane.f32.xlu0 %v622
    %v624 = vpop.xlane.xlu0 %623
    %v625 = vsel %vm603, %v602, -inf
    %626 = vmax.xlane.f32.xlu0 %v625
    %v627 = vpop.xlane.xlu0 %626
    %v628 = vsub.f32 %v595, %v606
    %v629 = vsub.f32 %v596, %v609
    %v630 = vsub.f32 %v597, %v612
    %v631 = vsub.f32 %v598, %v615
    %v632 = vsub.f32 %v599, %v618
    %v633 = vsub.f32 %v600, %v621
    %v634 = vsub.f32 %v601, %v624
    %v635 = vsub.f32 %v602, %v627
    %v636 = vmul.f32 %v628, 1.442695
    %v637 = vpow.pop %v636
    %v638 = vmul.f32 %v629, 1.442695
    %v639 = vpow.pop %v638
    %v640 = vmul.f32 %v630, 1.442695
    %v641 = vpow.pop %v640
    %v642 = vmul.f32 %v631, 1.442695
    %v643 = vpow.pop %v642
    %v644 = vmul.f32 %v632, 1.442695
    %v645 = vpow.pop %v644
    %v646 = vmul.f32 %v633, 1.442695
    %v647 = vpow.pop %v646
    %v648 = vmul.f32 %v634, 1.442695
    %v649 = vpow.pop %v648
    %v650 = vmul.f32 %v635, 1.442695
    %v651 = vpow.pop %v650
    %v652 = vsel %vm603, %v637, 0.0
    %653 = vadd.xlane.f32.xlu0 %v652
    %v654 = vpop.xlane.xlu0 %653
    %v655 = vsel %vm603, %v639, 0.0
    %656 = vadd.xlane.f32.xlu0 %v655
    %v657 = vpop.xlane.xlu0 %656
    %v658 = vsel %vm603, %v641, 0.0
    %659 = vadd.xlane.f32.xlu0 %v658
    %v660 = vpop.xlane.xlu0 %659
    %v661 = vsel %vm603, %v643, 0.0
    %662 = vadd.xlane.f32.xlu0 %v661
    %v663 = vpop.xlane.xlu0 %662
    %v664 = vsel %vm603, %v645, 0.0
    %665 = vadd.xlane.f32.xlu0 %v664
    %v666 = vpop.xlane.xlu0 %665
    %v667 = vsel %vm603, %v647, 0.0
    %668 = vadd.xlane.f32.xlu0 %v667
    %v669 = vpop.xlane.xlu0 %668
    %v670 = vsel %vm603, %v649, 0.0
    %671 = vadd.xlane.f32.xlu0 %v670
    %v672 = vpop.xlane.xlu0 %671
    %v673 = vsel %vm603, %v651, 0.0
    %674 = vadd.xlane.f32.xlu0 %v673
    %v675 = vpop.xlane.xlu0 %674
    %v676 = vrcp.pop %v654
    %v677 = vmul.f32 %v654, %v676
    %v678 = vsub.f32 1.0, %v677
    %v679 = vmul.f32 %v676, %v678
    %v680 = vadd.f32 %v676, %v679
    %vm681 = vweird.f32 %v654
    %vm682 = vweird.f32 %v676
    %vm683 = vmor %vm681, %vm682
    %v684 = vsel %vm683, %v676, %v680
    %v685 = vand.u32 2147483647, %v654
    %vm686 = vcmp.eq.f32.partialorder %v685, 8.507059e+37
    %v687 = vand.u32 %v654, 2147483648
    %v688 = vor.u32 1.1754944e-38, %v687
    %v689 = vsel %vm686, %v688, %v684
    %v690 = vmul.f32 %v637, %v689
    %v691 = vrcp.pop %v657
    %v692 = vmul.f32 %v657, %v691
    %v693 = vsub.f32 1.0, %v692
    %v694 = vmul.f32 %v691, %v693
    %v695 = vadd.f32 %v691, %v694
    %vm696 = vweird.f32 %v657
    %vm697 = vweird.f32 %v691
    %vm698 = vmor %vm696, %vm697
    %v699 = vsel %vm698, %v691, %v695
    %v700 = vand.u32 2147483647, %v657
    %vm701 = vcmp.eq.f32.partialorder %v700, 8.507059e+37
    %v702 = vand.u32 %v657, 2147483648
    %v703 = vor.u32 1.1754944e-38, %v702
    %v704 = vsel %vm701, %v703, %v699
    %v705 = vmul.f32 %v639, %v704
    %v706 = vrcp.pop %v660
    %v707 = vmul.f32 %v660, %v706
    %v708 = vsub.f32 1.0, %v707
    %v709 = vmul.f32 %v706, %v708
    %v710 = vadd.f32 %v706, %v709
    %vm711 = vweird.f32 %v660
    %vm712 = vweird.f32 %v706
    %vm713 = vmor %vm711, %vm712
    %v714 = vsel %vm713, %v706, %v710
    %v715 = vand.u32 2147483647, %v660
    %vm716 = vcmp.eq.f32.partialorder %v715, 8.507059e+37
    %v717 = vand.u32 %v660, 2147483648
    %v718 = vor.u32 1.1754944e-38, %v717
    %v719 = vsel %vm716, %v718, %v714
    %v720 = vmul.f32 %v641, %v719
    %v721 = vrcp.pop %v663
    %v722 = vmul.f32 %v663, %v721
    %v723 = vsub.f32 1.0, %v722
    %v724 = vmul.f32 %v721, %v723
    %v725 = vadd.f32 %v721, %v724
    %vm726 = vweird.f32 %v663
    %vm727 = vweird.f32 %v721
    %vm728 = vmor %vm726, %vm727
    %v729 = vsel %vm728, %v721, %v725
    %v730 = vand.u32 2147483647, %v663
    %vm731 = vcmp.eq.f32.partialorder %v730, 8.507059e+37
    %v732 = vand.u32 %v663, 2147483648
    %v733 = vor.u32 1.1754944e-38, %v732
    %v734 = vsel %vm731, %v733, %v729
    %v735 = vmul.f32 %v643, %v734
    %v736 = vrcp.pop %v666
    %v737 = vmul.f32 %v666, %v736
    %v738 = vsub.f32 1.0, %v737
    %v739 = vmul.f32 %v736, %v738
    %v740 = vadd.f32 %v736, %v739
    %vm741 = vweird.f32 %v666
    %vm742 = vweird.f32 %v736
    %vm743 = vmor %vm741, %vm742
    %v744 = vsel %vm743, %v736, %v740
    %v745 = vand.u32 2147483647, %v666
    %vm746 = vcmp.eq.f32.partialorder %v745, 8.507059e+37
    %v747 = vand.u32 %v666, 2147483648
    %v748 = vor.u32 1.1754944e-38, %v747
    %v749 = vsel %vm746, %v748, %v744
    %v750 = vmul.f32 %v645, %v749
    %v751 = vrcp.pop %v669
    %v752 = vmul.f32 %v669, %v751
    %v753 = vsub.f32 1.0, %v752
    %v754 = vmul.f32 %v751, %v753
    %v755 = vadd.f32 %v751, %v754
    %vm756 = vweird.f32 %v669
    %vm757 = vweird.f32 %v751
    %vm758 = vmor %vm756, %vm757
    %v759 = vsel %vm758, %v751, %v755
    %v760 = vand.u32 2147483647, %v669
    %vm761 = vcmp.eq.f32.partialorder %v760, 8.507059e+37
    %v762 = vand.u32 %v669, 2147483648
    %v763 = vor.u32 1.1754944e-38, %v762
    %v764 = vsel %vm761, %v763, %v759
    %v765 = vmul.f32 %v647, %v764
    %v766 = vrcp.pop %v672
    %v767 = vmul.f32 %v672, %v766
    %v768 = vsub.f32 1.0, %v767
    %v769 = vmul.f32 %v766, %v768
    %v770 = vadd.f32 %v766, %v769
    %vm771 = vweird.f32 %v672
    %vm772 = vweird.f32 %v766
    %vm773 = vmor %vm771, %vm772
    %v774 = vsel %vm773, %v766, %v770
    %v775 = vand.u32 2147483647, %v672
    %vm776 = vcmp.eq.f32.partialorder %v775, 8.507059e+37
    %v777 = vand.u32 %v672, 2147483648
    %v778 = vor.u32 1.1754944e-38, %v777
    %v779 = vsel %vm776, %v778, %v774
    %v780 = vmul.f32 %v649, %v779
    %v781 = vrcp.pop %v675
    %v782 = vmul.f32 %v675, %v781
    %v783 = vsub.f32 1.0, %v782
    %v784 = vmul.f32 %v781, %v783
    %v785 = vadd.f32 %v781, %v784
    %vm786 = vweird.f32 %v675
    %vm787 = vweird.f32 %v781
    %vm788 = vmor %vm786, %vm787
    %v789 = vsel %vm788, %v781, %v785
    %v790 = vand.u32 2147483647, %v675
    %vm791 = vcmp.eq.f32.partialorder %v790, 8.507059e+37
    %v792 = vand.u32 %v675, 2147483648
    %v793 = vor.u32 1.1754944e-38, %v792
    %v794 = vsel %vm791, %v793, %v789
    %v795 = vmul.f32 %v651, %v794
    %v796 = vpack.c.bf16 %v690, %v690
    %v797 = vpack.c.bf16 %v705, %v705
    %v798 = vpack.c.bf16 %v720, %v720
    %v799 = vpack.c.bf16 %v735, %v735
    %v800 = vpack.c.bf16 %v750, %v750
    %v801 = vpack.c.bf16 %v765, %v765
    %v802 = vpack.c.bf16 %v780, %v780
    %v803 = vpack.c.bf16 %v795, %v795
    %804 = vrot.lane.b32.xlu0 %v372, 64
    %v805 = vpop.permute.xlu0 %804
    %v807 = vsel %vm603, %v796, 0
    %vm809 = vcmask 1043456
    %v811 = vsel %vm809, %v805, 0
    %813 = vmatpush.bf16.msra.mxu0 0
    %814 = vmatpush.bf16.msra.mxu0 0
    %815 = vmatpush.bf16.msra.mxu0 0
    %816 = vmatpush.bf16.msra.mxu0 0
    %817 = vmatpush.bf16.msra.mxu0 0
    %818 = vmatpush.bf16.msra.mxu0 0
    %819 = vmatpush.bf16.msra.mxu0 0
    %820 = vmatpush.bf16.msra.mxu0 %v811
    %821 = vmatmul.bf16.gmra.mxu0 %v807
    %v822 = vpop.f32.mrf.mxu0
    %v823 = vadd.f32 0.0, %v822
    %v824 = vpop.f32.mrf.mxu0
    %825 = vdwg.mxu0
    %826 = vrot.lane.b32.xlu0 %v397, 64
    %v827 = vpop.permute.xlu0 %826
    %v829 = vsel %vm603, %v797, 0
    %v832 = vsel %vm809, %v827, 0
    %834 = vmatpush.bf16.msra.mxu0 0
    %835 = vmatpush.bf16.msra.mxu0 0
    %836 = vmatpush.bf16.msra.mxu0 0
    %837 = vmatpush.bf16.msra.mxu0 0
    %838 = vmatpush.bf16.msra.mxu0 0
    %839 = vmatpush.bf16.msra.mxu0 0
    %840 = vmatpush.bf16.msra.mxu0 0
    %841 = vmatpush.bf16.msra.mxu0 %v832
    %842 = vmatmul.bf16.gmra.mxu0 %v829
    %v843 = vpop.f32.mrf.mxu0
    %v844 = vadd.f32 0.0, %v843
    %v845 = vpop.f32.mrf.mxu0
    %846 = vdwg.mxu0
    %847 = vrot.lane.b32.xlu0 %v421, 64
    %v848 = vpop.permute.xlu0 %847
    %v850 = vsel %vm603, %v798, 0
    %v853 = vsel %vm809, %v848, 0
    %855 = vmatpush.bf16.msra.mxu0 0
    %856 = vmatpush.bf16.msra.mxu0 0
    %857 = vmatpush.bf16.msra.mxu0 0
    %858 = vmatpush.bf16.msra.mxu0 0
    %859 = vmatpush.bf16.msra.mxu0 0
    %860 = vmatpush.bf16.msra.mxu0 0
    %861 = vmatpush.bf16.msra.mxu0 0
    %862 = vmatpush.bf16.msra.mxu0 %v853
    %863 = vmatmul.bf16.gmra.mxu0 %v850
    %v864 = vpop.f32.mrf.mxu0
    %v865 = vadd.f32 0.0, %v864
    %v866 = vpop.f32.mrf.mxu0
    %867 = vdwg.mxu0
    %868 = vrot.lane.b32.xlu0 %v445, 64
    %v869 = vpop.permute.xlu0 %868
    %v871 = vsel %vm603, %v799, 0
    %v874 = vsel %vm809, %v869, 0
    %876 = vmatpush.bf16.msra.mxu0 0
    %877 = vmatpush.bf16.msra.mxu0 0
    %878 = vmatpush.bf16.msra.mxu0 0
    %879 = vmatpush.bf16.msra.mxu0 0
    %880 = vmatpush.bf16.msra.mxu0 0
    %881 = vmatpush.bf16.msra.mxu0 0
    %882 = vmatpush.bf16.msra.mxu0 0
    %883 = vmatpush.bf16.msra.mxu0 %v874
    %884 = vmatmul.bf16.gmra.mxu0 %v871
    %v885 = vpop.f32.mrf.mxu0
    %v886 = vadd.f32 0.0, %v885
    %v887 = vpop.f32.mrf.mxu0
    %888 = vdwg.mxu0
    %889 = vrot.lane.b32.xlu0 %v469, 64
    %v890 = vpop.permute.xlu0 %889
    %v892 = vsel %vm603, %v800, 0
    %v895 = vsel %vm809, %v890, 0
    %897 = vmatpush.bf16.msra.mxu0 0
    %898 = vmatpush.bf16.msra.mxu0 0
    %899 = vmatpush.bf16.msra.mxu0 0
    %900 = vmatpush.bf16.msra.mxu0 0
    %901 = vmatpush.bf16.msra.mxu0 0
    %902 = vmatpush.bf16.msra.mxu0 0
    %903 = vmatpush.bf16.msra.mxu0 0
    %904 = vmatpush.bf16.msra.mxu0 %v895
    %905 = vmatmul.bf16.gmra.mxu0 %v892
    %v906 = vpop.f32.mrf.mxu0
    %v907 = vadd.f32 0.0, %v906
    %v908 = vpop.f32.mrf.mxu0
    %909 = vdwg.mxu0
    %910 = vrot.lane.b32.xlu0 %v493, 64
    %v911 = vpop.permute.xlu0 %910
    %v913 = vsel %vm603, %v801, 0
    %v916 = vsel %vm809, %v911, 0
    %918 = vmatpush.bf16.msra.mxu0 0
    %919 = vmatpush.bf16.msra.mxu0 0
    %920 = vmatpush.bf16.msra.mxu0 0
    %921 = vmatpush.bf16.msra.mxu0 0
    %922 = vmatpush.bf16.msra.mxu0 0
    %923 = vmatpush.bf16.msra.mxu0 0
    %924 = vmatpush.bf16.msra.mxu0 0
    %925 = vmatpush.bf16.msra.mxu0 %v916
    %926 = vmatmul.bf16.gmra.mxu0 %v913
    %v927 = vpop.f32.mrf.mxu0
    %v928 = vadd.f32 0.0, %v927
    %v929 = vpop.f32.mrf.mxu0
    %930 = vdwg.mxu0
    %931 = vrot.lane.b32.xlu0 %v517, 64
    %v932 = vpop.permute.xlu0 %931
    %v934 = vsel %vm603, %v802, 0
    %v937 = vsel %vm809, %v932, 0
    %939 = vmatpush.bf16.msra.mxu0 0
    %940 = vmatpush.bf16.msra.mxu0 0
    %941 = vmatpush.bf16.msra.mxu0 0
    %942 = vmatpush.bf16.msra.mxu0 0
    %943 = vmatpush.bf16.msra.mxu0 0
    %944 = vmatpush.bf16.msra.mxu0 0
    %945 = vmatpush.bf16.msra.mxu0 0
    %946 = vmatpush.bf16.msra.mxu0 %v937
    %947 = vmatmul.bf16.gmra.mxu0 %v934
    %v948 = vpop.f32.mrf.mxu0
    %v949 = vadd.f32 0.0, %v948
    %v950 = vpop.f32.mrf.mxu0
    %951 = vdwg.mxu0
    %952 = vrot.lane.b32.xlu0 %v541, 64
    %v953 = vpop.permute.xlu0 %952
    %v955 = vsel %vm603, %v803, 0
    %v958 = vsel %vm809, %v953, 0
    %960 = vmatpush.bf16.msra.mxu0 0
    %961 = vmatpush.bf16.msra.mxu0 0
    %962 = vmatpush.bf16.msra.mxu0 0
    %963 = vmatpush.bf16.msra.mxu0 0
    %964 = vmatpush.bf16.msra.mxu0 0
    %965 = vmatpush.bf16.msra.mxu0 0
    %966 = vmatpush.bf16.msra.mxu0 0
    %967 = vmatpush.bf16.msra.mxu0 %v958
    %968 = vmatmul.bf16.gmra.mxu0 %v955
    %v969 = vpop.f32.mrf.mxu0
    %v970 = vadd.f32 0.0, %v969
    %v971 = vpop.f32.mrf.mxu0
    %972 = vdwg.mxu0
    %v973 = vpack.c.bf16 %v844, %v823
    %v974 = vpack.c.bf16 %v886, %v865
    %v975 = vpack.c.bf16 %v928, %v907
    %v976 = vpack.c.bf16 %v970, %v949
    %v977 = vpack.c.bf16 %v359, %v358
    %978 = vrot.lane.b32.xlu0 %v372, 112
    %v979 = vpop.permute.xlu0 %978
    %980 = vrot.lane.b32.xlu0 %v372, 80
    %v981 = vpop.permute.xlu0 %980
    %v983 = vsel %vm375, %v979, 0
    %v986 = vsel %vm375, %v981, 0
    %988 = vmatpush.bf16.xpose.msra.mxu0 0
    %989 = vmatpush.bf16.xpose.msra.mxu0 0
    %990 = vmatpush.bf16.xpose.msra.mxu0 0
    %991 = vmatpush.bf16.xpose.msra.mxu0 0
    %992 = vmatpush.bf16.xpose.msra.mxu0 0
    %993 = vmatpush.bf16.xpose.msra.mxu0 0
    %994 = vmatpush.bf16.xpose.msra.mxu0 0
    %995 = vmatpush.bf16.xpose.msra.mxu0 %v986
    %996 = vmatmul.bf16.gmra.mxu0 %v983
    %v997 = vpop.f32.mrf.mxu0
    %v998 = vadd.f32 0.0, %v997
    %v999 = vpop.f32.mrf.mxu0
    %1000 = vdwg.mxu0
    %1001 = vrot.lane.b32.xlu0 %v397, 112
    %v1002 = vpop.permute.xlu0 %1001
    %1003 = vrot.lane.b32.xlu0 %v397, 80
    %v1004 = vpop.permute.xlu0 %1003
    %v1006 = vsel %vm375, %v1002, 0
    %v1009 = vsel %vm375, %v1004, 0
    %1011 = vmatpush.bf16.xpose.msra.mxu0 0
    %1012 = vmatpush.bf16.xpose.msra.mxu0 0
    %1013 = vmatpush.bf16.xpose.msra.mxu0 0
    %1014 = vmatpush.bf16.xpose.msra.mxu0 0
    %1015 = vmatpush.bf16.xpose.msra.mxu0 0
    %1016 = vmatpush.bf16.xpose.msra.mxu0 0
    %1017 = vmatpush.bf16.xpose.msra.mxu0 0
    %1018 = vmatpush.bf16.xpose.msra.mxu0 %v1009
    %1019 = vmatmul.bf16.gmra.mxu0 %v1006
    %v1020 = vpop.f32.mrf.mxu0
    %v1021 = vadd.f32 0.0, %v1020
    %v1022 = vpop.f32.mrf.mxu0
    %1023 = vdwg.mxu0
    %1024 = vrot.lane.b32.xlu0 %v421, 112
    %v1025 = vpop.permute.xlu0 %1024
    %1026 = vrot.lane.b32.xlu0 %v421, 80
    %v1027 = vpop.permute.xlu0 %1026
    %v1029 = vsel %vm375, %v1025, 0
    %v1032 = vsel %vm375, %v1027, 0
    %1034 = vmatpush.bf16.xpose.msra.mxu0 0
    %1035 = vmatpush.bf16.xpose.msra.mxu0 0
    %1036 = vmatpush.bf16.xpose.msra.mxu0 0
    %1037 = vmatpush.bf16.xpose.msra.mxu0 0
    %1038 = vmatpush.bf16.xpose.msra.mxu0 0
    %1039 = vmatpush.bf16.xpose.msra.mxu0 0
    %1040 = vmatpush.bf16.xpose.msra.mxu0 0
    %1041 = vmatpush.bf16.xpose.msra.mxu0 %v1032
    %1042 = vmatmul.bf16.gmra.mxu0 %v1029
    %v1043 = vpop.f32.mrf.mxu0
    %v1044 = vadd.f32 0.0, %v1043
    %v1045 = vpop.f32.mrf.mxu0
    %1046 = vdwg.mxu0
    %1047 = vrot.lane.b32.xlu0 %v445, 112
    %v1048 = vpop.permute.xlu0 %1047
    %1049 = vrot.lane.b32.xlu0 %v445, 80
    %v1050 = vpop.permute.xlu0 %1049
    %v1052 = vsel %vm375, %v1048, 0
    %v1055 = vsel %vm375, %v1050, 0
    %1057 = vmatpush.bf16.xpose.msra.mxu0 0
    %1058 = vmatpush.bf16.xpose.msra.mxu0 0
    %1059 = vmatpush.bf16.xpose.msra.mxu0 0
    %1060 = vmatpush.bf16.xpose.msra.mxu0 0
    %1061 = vmatpush.bf16.xpose.msra.mxu0 0
    %1062 = vmatpush.bf16.xpose.msra.mxu0 0
    %1063 = vmatpush.bf16.xpose.msra.mxu0 0
    %1064 = vmatpush.bf16.xpose.msra.mxu0 %v1055
    %1065 = vmatmul.bf16.gmra.mxu0 %v1052
    %v1066 = vpop.f32.mrf.mxu0
    %v1067 = vadd.f32 0.0, %v1066
    %v1068 = vpop.f32.mrf.mxu0
    %1069 = vdwg.mxu0
    %1070 = vrot.lane.b32.xlu0 %v469, 112
    %v1071 = vpop.permute.xlu0 %1070
    %1072 = vrot.lane.b32.xlu0 %v469, 80
    %v1073 = vpop.permute.xlu0 %1072
    %v1075 = vsel %vm375, %v1071, 0
    %v1078 = vsel %vm375, %v1073, 0
    %1080 = vmatpush.bf16.xpose.msra.mxu0 0
    %1081 = vmatpush.bf16.xpose.msra.mxu0 0
    %1082 = vmatpush.bf16.xpose.msra.mxu0 0
    %1083 = vmatpush.bf16.xpose.msra.mxu0 0
    %1084 = vmatpush.bf16.xpose.msra.mxu0 0
    %1085 = vmatpush.bf16.xpose.msra.mxu0 0
    %1086 = vmatpush.bf16.xpose.msra.mxu0 0
    %1087 = vmatpush.bf16.xpose.msra.mxu0 %v1078
    %1088 = vmatmul.bf16.gmra.mxu0 %v1075
    %v1089 = vpop.f32.mrf.mxu0
    %v1090 = vadd.f32 0.0, %v1089
    %v1091 = vpop.f32.mrf.mxu0
    %1092 = vdwg.mxu0
    %1093 = vrot.lane.b32.xlu0 %v493, 112
    %v1094 = vpop.permute.xlu0 %1093
    %1095 = vrot.lane.b32.xlu0 %v493, 80
    %v1096 = vpop.permute.xlu0 %1095
    %v1098 = vsel %vm375, %v1094, 0
    %v1101 = vsel %vm375, %v1096, 0
    %1103 = vmatpush.bf16.xpose.msra.mxu0 0
    %1104 = vmatpush.bf16.xpose.msra.mxu0 0
    %1105 = vmatpush.bf16.xpose.msra.mxu0 0
    %1106 = vmatpush.bf16.xpose.msra.mxu0 0
    %1107 = vmatpush.bf16.xpose.msra.mxu0 0
    %1108 = vmatpush.bf16.xpose.msra.mxu0 0
    %1109 = vmatpush.bf16.xpose.msra.mxu0 0
    %1110 = vmatpush.bf16.xpose.msra.mxu0 %v1101
    %1111 = vmatmul.bf16.gmra.mxu0 %v1098
    %v1112 = vpop.f32.mrf.mxu0
    %v1113 = vadd.f32 0.0, %v1112
    %v1114 = vpop.f32.mrf.mxu0
    %1115 = vdwg.mxu0
    %1116 = vrot.lane.b32.xlu0 %v517, 112
    %v1117 = vpop.permute.xlu0 %1116
    %1118 = vrot.lane.b32.xlu0 %v517, 80
    %v1119 = vpop.permute.xlu0 %1118
    %v1121 = vsel %vm375, %v1117, 0
    %v1124 = vsel %vm375, %v1119, 0
    %1126 = vmatpush.bf16.xpose.msra.mxu0 0
    %1127 = vmatpush.bf16.xpose.msra.mxu0 0
    %1128 = vmatpush.bf16.xpose.msra.mxu0 0
    %1129 = vmatpush.bf16.xpose.msra.mxu0 0
    %1130 = vmatpush.bf16.xpose.msra.mxu0 0
    %1131 = vmatpush.bf16.xpose.msra.mxu0 0
    %1132 = vmatpush.bf16.xpose.msra.mxu0 0
    %1133 = vmatpush.bf16.xpose.msra.mxu0 %v1124
    %1134 = vmatmul.bf16.gmra.mxu0 %v1121
    %v1135 = vpop.f32.mrf.mxu0
    %v1136 = vadd.f32 0.0, %v1135
    %v1137 = vpop.f32.mrf.mxu0
    %1138 = vdwg.mxu0
    %1139 = vrot.lane.b32.xlu0 %v541, 112
    %v1140 = vpop.permute.xlu0 %1139
    %1141 = vrot.lane.b32.xlu0 %v541, 80
    %v1142 = vpop.permute.xlu0 %1141
    %v1144 = vsel %vm375, %v1140, 0
    %v1147 = vsel %vm375, %v1142, 0
    %1149 = vmatpush.bf16.xpose.msra.mxu0 0
    %1150 = vmatpush.bf16.xpose.msra.mxu0 0
    %1151 = vmatpush.bf16.xpose.msra.mxu0 0
    %1152 = vmatpush.bf16.xpose.msra.mxu0 0
    %1153 = vmatpush.bf16.xpose.msra.mxu0 0
    %1154 = vmatpush.bf16.xpose.msra.mxu0 0
    %1155 = vmatpush.bf16.xpose.msra.mxu0 0
    %1156 = vmatpush.bf16.xpose.msra.mxu0 %v1147
    %1157 = vmatmul.bf16.gmra.mxu0 %v1144
    %v1158 = vpop.f32.mrf.mxu0
    %v1159 = vadd.f32 0.0, %v1158
    %v1160 = vpop.f32.mrf.mxu0
    %1161 = vdwg.mxu0
    %v1162 = vmul.f32 %v998, 0.25
    %v1163 = vmul.f32 %v1021, 0.25
    %v1164 = vmul.f32 %v1044, 0.25
    %v1165 = vmul.f32 %v1067, 0.25
    %v1166 = vmul.f32 %v1090, 0.25
    %v1167 = vmul.f32 %v1113, 0.25
    %v1168 = vmul.f32 %v1136, 0.25
    %v1169 = vmul.f32 %v1159, 0.25
    %v1170 = vadd.f32 %v1162, %v579
    %v1171 = vadd.f32 %v1163, %v580
    %v1172 = vadd.f32 %v1164, %v581
    %v1173 = vadd.f32 %v1165, %v582
    %v1174 = vadd.f32 %v1166, %v583
    %v1175 = vadd.f32 %v1167, %v584
    %v1176 = vadd.f32 %v1168, %v585
    %v1177 = vadd.f32 %v1169, %v586
    %v1178 = vsel %vm603, %v1170, -inf
    %1179 = vmax.xlane.f32.xlu0 %v1178
    %v1180 = vpop.xlane.xlu0 %1179
    %v1181 = vsel %vm603, %v1171, -inf
    %1182 = vmax.xlane.f32.xlu0 %v1181
    %v1183 = vpop.xlane.xlu0 %1182
    %v1184 = vsel %vm603, %v1172, -inf
    %1185 = vmax.xlane.f32.xlu0 %v1184
    %v1186 = vpop.xlane.xlu0 %1185
    %v1187 = vsel %vm603, %v1173, -inf
    %1188 = vmax.xlane.f32.xlu0 %v1187
    %v1189 = vpop.xlane.xlu0 %1188
    %v1190 = vsel %vm603, %v1174, -inf
    %1191 = vmax.xlane.f32.xlu0 %v1190
    %v1192 = vpop.xlane.xlu0 %1191
    %v1193 = vsel %vm603, %v1175, -inf
    %1194 = vmax.xlane.f32.xlu0 %v1193
    %v1195 = vpop.xlane.xlu0 %1194
    %v1196 = vsel %vm603, %v1176, -inf
    %1197 = vmax.xlane.f32.xlu0 %v1196
    %v1198 = vpop.xlane.xlu0 %1197
    %v1199 = vsel %vm603, %v1177, -inf
    %1200 = vmax.xlane.f32.xlu0 %v1199
    %v1201 = vpop.xlane.xlu0 %1200
    %v1202 = vsub.f32 %v1170, %v1180
    %v1203 = vsub.f32 %v1171, %v1183
    %v1204 = vsub.f32 %v1172, %v1186
    %v1205 = vsub.f32 %v1173, %v1189
    %v1206 = vsub.f32 %v1174, %v1192
    %v1207 = vsub.f32 %v1175, %v1195
    %v1208 = vsub.f32 %v1176, %v1198
    %v1209 = vsub.f32 %v1177, %v1201
    %v1210 = vmul.f32 %v1202, 1.442695
    %v1211 = vpow.pop %v1210
    %v1212 = vmul.f32 %v1203, 1.442695
    %v1213 = vpow.pop %v1212
    %v1214 = vmul.f32 %v1204, 1.442695
    %v1215 = vpow.pop %v1214
    %v1216 = vmul.f32 %v1205, 1.442695
    %v1217 = vpow.pop %v1216
    %v1218 = vmul.f32 %v1206, 1.442695
    %v1219 = vpow.pop %v1218
    %v1220 = vmul.f32 %v1207, 1.442695
    %v1221 = vpow.pop %v1220
    %v1222 = vmul.f32 %v1208, 1.442695
    %v1223 = vpow.pop %v1222
    %v1224 = vmul.f32 %v1209, 1.442695
    %v1225 = vpow.pop %v1224
    %v1226 = vsel %vm603, %v1211, 0.0
    %1227 = vadd.xlane.f32.xlu0 %v1226
    %v1228 = vpop.xlane.xlu0 %1227
    %v1229 = vsel %vm603, %v1213, 0.0
    %1230 = vadd.xlane.f32.xlu0 %v1229
    %v1231 = vpop.xlane.xlu0 %1230
    %v1232 = vsel %vm603, %v1215, 0.0
    %1233 = vadd.xlane.f32.xlu0 %v1232
    %v1234 = vpop.xlane.xlu0 %1233
    %v1235 = vsel %vm603, %v1217, 0.0
    %1236 = vadd.xlane.f32.xlu0 %v1235
    %v1237 = vpop.xlane.xlu0 %1236
    %v1238 = vsel %vm603, %v1219, 0.0
    %1239 = vadd.xlane.f32.xlu0 %v1238
    %v1240 = vpop.xlane.xlu0 %1239
    %v1241 = vsel %vm603, %v1221, 0.0
    %1242 = vadd.xlane.f32.xlu0 %v1241
    %v1243 = vpop.xlane.xlu0 %1242
    %v1244 = vsel %vm603, %v1223, 0.0
    %1245 = vadd.xlane.f32.xlu0 %v1244
    %v1246 = vpop.xlane.xlu0 %1245
    %v1247 = vsel %vm603, %v1225, 0.0
    %1248 = vadd.xlane.f32.xlu0 %v1247
    %v1249 = vpop.xlane.xlu0 %1248
    %v1250 = vrcp.pop %v1228
    %v1251 = vmul.f32 %v1228, %v1250
    %v1252 = vsub.f32 1.0, %v1251
    %v1253 = vmul.f32 %v1250, %v1252
    %v1254 = vadd.f32 %v1250, %v1253
    %vm1255 = vweird.f32 %v1228
    %vm1256 = vweird.f32 %v1250
    %vm1257 = vmor %vm1255, %vm1256
    %v1258 = vsel %vm1257, %v1250, %v1254
    %v1259 = vand.u32 2147483647, %v1228
    %vm1260 = vcmp.eq.f32.partialorder %v1259, 8.507059e+37
    %v1261 = vand.u32 %v1228, 2147483648
    %v1262 = vor.u32 1.1754944e-38, %v1261
    %v1263 = vsel %vm1260, %v1262, %v1258
    %v1264 = vmul.f32 %v1211, %v1263
    %v1265 = vrcp.pop %v1231
    %v1266 = vmul.f32 %v1231, %v1265
    %v1267 = vsub.f32 1.0, %v1266
    %v1268 = vmul.f32 %v1265, %v1267
    %v1269 = vadd.f32 %v1265, %v1268
    %vm1270 = vweird.f32 %v1231
    %vm1271 = vweird.f32 %v1265
    %vm1272 = vmor %vm1270, %vm1271
    %v1273 = vsel %vm1272, %v1265, %v1269
    %v1274 = vand.u32 2147483647, %v1231
    %vm1275 = vcmp.eq.f32.partialorder %v1274, 8.507059e+37
    %v1276 = vand.u32 %v1231, 2147483648
    %v1277 = vor.u32 1.1754944e-38, %v1276
    %v1278 = vsel %vm1275, %v1277, %v1273
    %v1279 = vmul.f32 %v1213, %v1278
    %v1280 = vrcp.pop %v1234
    %v1281 = vmul.f32 %v1234, %v1280
    %v1282 = vsub.f32 1.0, %v1281
    %v1283 = vmul.f32 %v1280, %v1282
    %v1284 = vadd.f32 %v1280, %v1283
    %vm1285 = vweird.f32 %v1234
    %vm1286 = vweird.f32 %v1280
    %vm1287 = vmor %vm1285, %vm1286
    %v1288 = vsel %vm1287, %v1280, %v1284
    %v1289 = vand.u32 2147483647, %v1234
    %vm1290 = vcmp.eq.f32.partialorder %v1289, 8.507059e+37
    %v1291 = vand.u32 %v1234, 2147483648
    %v1292 = vor.u32 1.1754944e-38, %v1291
    %v1293 = vsel %vm1290, %v1292, %v1288
    %v1294 = vmul.f32 %v1215, %v1293
    %v1295 = vrcp.pop %v1237
    %v1296 = vmul.f32 %v1237, %v1295
    %v1297 = vsub.f32 1.0, %v1296
    %v1298 = vmul.f32 %v1295, %v1297
    %v1299 = vadd.f32 %v1295, %v1298
    %vm1300 = vweird.f32 %v1237
    %vm1301 = vweird.f32 %v1295
    %vm1302 = vmor %vm1300, %vm1301
    %v1303 = vsel %vm1302, %v1295, %v1299
    %v1304 = vand.u32 2147483647, %v1237
    %vm1305 = vcmp.eq.f32.partialorder %v1304, 8.507059e+37
    %v1306 = vand.u32 %v1237, 2147483648
    %v1307 = vor.u32 1.1754944e-38, %v1306
    %v1308 = vsel %vm1305, %v1307, %v1303
    %v1309 = vmul.f32 %v1217, %v1308
    %v1310 = vrcp.pop %v1240
    %v1311 = vmul.f32 %v1240, %v1310
    %v1312 = vsub.f32 1.0, %v1311
    %v1313 = vmul.f32 %v1310, %v1312
    %v1314 = vadd.f32 %v1310, %v1313
    %vm1315 = vweird.f32 %v1240
    %vm1316 = vweird.f32 %v1310
    %vm1317 = vmor %vm1315, %vm1316
    %v1318 = vsel %vm1317, %v1310, %v1314
    %v1319 = vand.u32 2147483647, %v1240
    %vm1320 = vcmp.eq.f32.partialorder %v1319, 8.507059e+37
    %v1321 = vand.u32 %v1240, 2147483648
    %v1322 = vor.u32 1.1754944e-38, %v1321
    %v1323 = vsel %vm1320, %v1322, %v1318
    %v1324 = vmul.f32 %v1219, %v1323
    %v1325 = vrcp.pop %v1243
    %v1326 = vmul.f32 %v1243, %v1325
    %v1327 = vsub.f32 1.0, %v1326
    %v1328 = vmul.f32 %v1325, %v1327
    %v1329 = vadd.f32 %v1325, %v1328
    %vm1330 = vweird.f32 %v1243
    %vm1331 = vweird.f32 %v1325
    %vm1332 = vmor %vm1330, %vm1331
    %v1333 = vsel %vm1332, %v1325, %v1329
    %v1334 = vand.u32 2147483647, %v1243
    %vm1335 = vcmp.eq.f32.partialorder %v1334, 8.507059e+37
    %v1336 = vand.u32 %v1243, 2147483648
    %v1337 = vor.u32 1.1754944e-38, %v1336
    %v1338 = vsel %vm1335, %v1337, %v1333
    %v1339 = vmul.f32 %v1221, %v1338
    %v1340 = vrcp.pop %v1246
    %v1341 = vmul.f32 %v1246, %v1340
    %v1342 = vsub.f32 1.0, %v1341
    %v1343 = vmul.f32 %v1340, %v1342
    %v1344 = vadd.f32 %v1340, %v1343
    %vm1345 = vweird.f32 %v1246
    %vm1346 = vweird.f32 %v1340
    %vm1347 = vmor %vm1345, %vm1346
    %v1348 = vsel %vm1347, %v1340, %v1344
    %v1349 = vand.u32 2147483647, %v1246
    %vm1350 = vcmp.eq.f32.partialorder %v1349, 8.507059e+37
    %v1351 = vand.u32 %v1246, 2147483648
    %v1352 = vor.u32 1.1754944e-38, %v1351
    %v1353 = vsel %vm1350, %v1352, %v1348
    %v1354 = vmul.f32 %v1223, %v1353
    %v1355 = vrcp.pop %v1249
    %v1356 = vmul.f32 %v1249, %v1355
    %v1357 = vsub.f32 1.0, %v1356
    %v1358 = vmul.f32 %v1355, %v1357
    %v1359 = vadd.f32 %v1355, %v1358
    %vm1360 = vweird.f32 %v1249
    %vm1361 = vweird.f32 %v1355
    %vm1362 = vmor %vm1360, %vm1361
    %v1363 = vsel %vm1362, %v1355, %v1359
    %v1364 = vand.u32 2147483647, %v1249
    %vm1365 = vcmp.eq.f32.partialorder %v1364, 8.507059e+37
    %v1366 = vand.u32 %v1249, 2147483648
    %v1367 = vor.u32 1.1754944e-38, %v1366
    %v1368 = vsel %vm1365, %v1367, %v1363
    %v1369 = vmul.f32 %v1225, %v1368
    %v1370 = vpack.c.bf16 %v1264, %v1264
    %v1371 = vpack.c.bf16 %v1279, %v1279
    %v1372 = vpack.c.bf16 %v1294, %v1294
    %v1373 = vpack.c.bf16 %v1309, %v1309
    %v1374 = vpack.c.bf16 %v1324, %v1324
    %v1375 = vpack.c.bf16 %v1339, %v1339
    %v1376 = vpack.c.bf16 %v1354, %v1354
    %v1377 = vpack.c.bf16 %v1369, %v1369
    %1378 = vrot.lane.b32.xlu0 %v372, 48
    %v1379 = vpop.permute.xlu0 %1378
    %v1381 = vsel %vm603, %v1370, 0
    %v1384 = vsel %vm809, %v1379, 0
    %1386 = vmatpush.bf16.msra.mxu0 0
    %1387 = vmatpush.bf16.msra.mxu0 0
    %1388 = vmatpush.bf16.msra.mxu0 0
    %1389 = vmatpush.bf16.msra.mxu0 0
    %1390 = vmatpush.bf16.msra.mxu0 0
    %1391 = vmatpush.bf16.msra.mxu0 0
    %1392 = vmatpush.bf16.msra.mxu0 0
    %1393 = vmatpush.bf16.msra.mxu0 %v1384
    %1394 = vmatmul.bf16.gmra.mxu0 %v1381
    %v1395 = vpop.f32.mrf.mxu0
    %v1396 = vadd.f32 0.0, %v1395
    %v1397 = vpop.f32.mrf.mxu0
    %1398 = vdwg.mxu0
    %1399 = vrot.lane.b32.xlu0 %v397, 48
    %v1400 = vpop.permute.xlu0 %1399
    %v1402 = vsel %vm603, %v1371, 0
    %v1405 = vsel %vm809, %v1400, 0
    %1407 = vmatpush.bf16.msra.mxu0 0
    %1408 = vmatpush.bf16.msra.mxu0 0
    %1409 = vmatpush.bf16.msra.mxu0 0
    %1410 = vmatpush.bf16.msra.mxu0 0
    %1411 = vmatpush.bf16.msra.mxu0 0
    %1412 = vmatpush.bf16.msra.mxu0 0
    %1413 = vmatpush.bf16.msra.mxu0 0
    %1414 = vmatpush.bf16.msra.mxu0 %v1405
    %1415 = vmatmul.bf16.gmra.mxu0 %v1402
    %v1416 = vpop.f32.mrf.mxu0
    %v1417 = vadd.f32 0.0, %v1416
    %v1418 = vpop.f32.mrf.mxu0
    %1419 = vdwg.mxu0
    %1420 = vrot.lane.b32.xlu0 %v421, 48
    %v1421 = vpop.permute.xlu0 %1420
    %v1423 = vsel %vm603, %v1372, 0
    %v1426 = vsel %vm809, %v1421, 0
    %1428 = vmatpush.bf16.msra.mxu0 0
    %1429 = vmatpush.bf16.msra.mxu0 0
    %1430 = vmatpush.bf16.msra.mxu0 0
    %1431 = vmatpush.bf16.msra.mxu0 0
    %1432 = vmatpush.bf16.msra.mxu0 0
    %1433 = vmatpush.bf16.msra.mxu0 0
    %1434 = vmatpush.bf16.msra.mxu0 0
    %1435 = vmatpush.bf16.msra.mxu0 %v1426
    %1436 = vmatmul.bf16.gmra.mxu0 %v1423
    %v1437 = vpop.f32.mrf.mxu0
    %v1438 = vadd.f32 0.0, %v1437
    %v1439 = vpop.f32.mrf.mxu0
    %1440 = vdwg.mxu0
    %1441 = vrot.lane.b32.xlu0 %v445, 48
    %v1442 = vpop.permute.xlu0 %1441
    %v1444 = vsel %vm603, %v1373, 0
    %v1447 = vsel %vm809, %v1442, 0
    %1449 = vmatpush.bf16.msra.mxu0 0
    %1450 = vmatpush.bf16.msra.mxu0 0
    %1451 = vmatpush.bf16.msra.mxu0 0
    %1452 = vmatpush.bf16.msra.mxu0 0
    %1453 = vmatpush.bf16.msra.mxu0 0
    %1454 = vmatpush.bf16.msra.mxu0 0
    %1455 = vmatpush.bf16.msra.mxu0 0
    %1456 = vmatpush.bf16.msra.mxu0 %v1447
    %1457 = vmatmul.bf16.gmra.mxu0 %v1444
    %v1458 = vpop.f32.mrf.mxu0
    %v1459 = vadd.f32 0.0, %v1458
    %v1460 = vpop.f32.mrf.mxu0
    %1461 = vdwg.mxu0
    %1462 = vrot.lane.b32.xlu0 %v469, 48
    %v1463 = vpop.permute.xlu0 %1462
    %v1465 = vsel %vm603, %v1374, 0
    %v1468 = vsel %vm809, %v1463, 0
    %1470 = vmatpush.bf16.msra.mxu0 0
    %1471 = vmatpush.bf16.msra.mxu0 0
    %1472 = vmatpush.bf16.msra.mxu0 0
    %1473 = vmatpush.bf16.msra.mxu0 0
    %1474 = vmatpush.bf16.msra.mxu0 0
    %1475 = vmatpush.bf16.msra.mxu0 0
    %1476 = vmatpush.bf16.msra.mxu0 0
    %1477 = vmatpush.bf16.msra.mxu0 %v1468
    %1478 = vmatmul.bf16.gmra.mxu0 %v1465
    %v1479 = vpop.f32.mrf.mxu0
    %v1480 = vadd.f32 0.0, %v1479
    %v1481 = vpop.f32.mrf.mxu0
    %1482 = vdwg.mxu0
    %1483 = vrot.lane.b32.xlu0 %v493, 48
    %v1484 = vpop.permute.xlu0 %1483
    %v1486 = vsel %vm603, %v1375, 0
    %v1489 = vsel %vm809, %v1484, 0
    %1491 = vmatpush.bf16.msra.mxu0 0
    %1492 = vmatpush.bf16.msra.mxu0 0
    %1493 = vmatpush.bf16.msra.mxu0 0
    %1494 = vmatpush.bf16.msra.mxu0 0
    %1495 = vmatpush.bf16.msra.mxu0 0
    %1496 = vmatpush.bf16.msra.mxu0 0
    %1497 = vmatpush.bf16.msra.mxu0 0
    %1498 = vmatpush.bf16.msra.mxu0 %v1489
    %1499 = vmatmul.bf16.gmra.mxu0 %v1486
    %v1500 = vpop.f32.mrf.mxu0
    %v1501 = vadd.f32 0.0, %v1500
    %v1502 = vpop.f32.mrf.mxu0
    %1503 = vdwg.mxu0
    %1504 = vrot.lane.b32.xlu0 %v517, 48
    %v1505 = vpop.permute.xlu0 %1504
    %v1507 = vsel %vm603, %v1376, 0
    %v1510 = vsel %vm809, %v1505, 0
    %1512 = vmatpush.bf16.msra.mxu0 0
    %1513 = vmatpush.bf16.msra.mxu0 0
    %1514 = vmatpush.bf16.msra.mxu0 0
    %1515 = vmatpush.bf16.msra.mxu0 0
    %1516 = vmatpush.bf16.msra.mxu0 0
    %1517 = vmatpush.bf16.msra.mxu0 0
    %1518 = vmatpush.bf16.msra.mxu0 0
    %1519 = vmatpush.bf16.msra.mxu0 %v1510
    %1520 = vmatmul.bf16.gmra.mxu0 %v1507
    %v1521 = vpop.f32.mrf.mxu0
    %v1522 = vadd.f32 0.0, %v1521
    %v1523 = vpop.f32.mrf.mxu0
    %1524 = vdwg.mxu0
    %1525 = vrot.lane.b32.xlu0 %v541, 48
    %v1526 = vpop.permute.xlu0 %1525
    %v1528 = vsel %vm603, %v1377, 0
    %v1531 = vsel %vm809, %v1526, 0
    %1533 = vmatpush.bf16.msra.mxu0 0
    %1534 = vmatpush.bf16.msra.mxu0 0
    %1535 = vmatpush.bf16.msra.mxu0 0
    %1536 = vmatpush.bf16.msra.mxu0 0
    %1537 = vmatpush.bf16.msra.mxu0 0
    %1538 = vmatpush.bf16.msra.mxu0 0
    %1539 = vmatpush.bf16.msra.mxu0 0
    %1540 = vmatpush.bf16.msra.mxu0 %v1531
    %1541 = vmatmul.bf16.gmra.mxu0 %v1528
    %v1542 = vpop.f32.mrf.mxu0
    %v1543 = vadd.f32 0.0, %v1542
    %v1544 = vpop.f32.mrf.mxu0
    %1545 = vdwg.mxu0
    %v1546 = vpack.c.bf16 %v1417, %v1396
    %v1547 = vpack.c.bf16 %v1459, %v1438
    %v1548 = vpack.c.bf16 %v1501, %v1480
    %v1549 = vpack.c.bf16 %v1543, %v1522
    %v1550 = vpack.c.bf16 %v361, %v360
    %v1552 = vsel %vm375, %v1546, 0
    %v1555 = vsel %vm375, %v1547, 0
    %v1558 = vsel %vm375, %v1548, 0
    %v1561 = vsel %vm375, %v1549, 0
    %1563 = vmatpush.bf16.msra.mxu0 0
    %1564 = vmatpush.bf16.msra.mxu0 0
    %1565 = vmatpush.bf16.msra.mxu0 0
    %1566 = vmatpush.bf16.msra.mxu0 0
    %1567 = vmatpush.bf16.msra.mxu0 0
    %1568 = vmatpush.bf16.msra.mxu0 0
    %1569 = vmatpush.bf16.msra.mxu0 0
    %1570 = vmatpush.bf16.msra.mxu0 %v1550
    %1571 = vmatmul.bf16.gmra.mxu0 %v1552
    %v1572 = vpop.f32.mrf.mxu0
    %v1573 = vadd.f32 0.0, %v1572
    %v1574 = vpop.f32.mrf.mxu0
    %v1575 = vadd.f32 0.0, %v1574
    %1576 = vmatmul.bf16.gmra.mxu0 %v1555
    %v1577 = vpop.f32.mrf.mxu0
    %v1578 = vadd.f32 0.0, %v1577
    %v1579 = vpop.f32.mrf.mxu0
    %v1580 = vadd.f32 0.0, %v1579
    %1581 = vmatmul.bf16.gmra.mxu0 %v1558
    %v1582 = vpop.f32.mrf.mxu0
    %v1583 = vadd.f32 0.0, %v1582
    %v1584 = vpop.f32.mrf.mxu0
    %v1585 = vadd.f32 0.0, %v1584
    %1586 = vmatmul.bf16.gmra.mxu0 %v1561
    %v1587 = vpop.f32.mrf.mxu0
    %v1588 = vadd.f32 0.0, %v1587
    %v1589 = vpop.f32.mrf.mxu0
    %v1590 = vadd.f32 0.0, %v1589
    %1591 = vdwg.mxu0
    %v1593 = vsel %vm375, %v973, 0
    %v1596 = vsel %vm375, %v974, 0
    %v1599 = vsel %vm375, %v975, 0
    %v1602 = vsel %vm375, %v976, 0
    %1604 = vmatpush.bf16.msra.mxu0 0
    %1605 = vmatpush.bf16.msra.mxu0 0
    %1606 = vmatpush.bf16.msra.mxu0 0
    %1607 = vmatpush.bf16.msra.mxu0 0
    %1608 = vmatpush.bf16.msra.mxu0 0
    %1609 = vmatpush.bf16.msra.mxu0 0
    %1610 = vmatpush.bf16.msra.mxu0 0
    %1611 = vmatpush.bf16.msra.mxu0 %v977
    %1612 = vmatmul.bf16.gmra.mxu0 %v1593
    %v1613 = vpop.f32.mrf.mxu0
    %v1614 = vadd.f32 %v1573, %v1613
    %v1615 = vpop.f32.mrf.mxu0
    %v1616 = vadd.f32 %v1575, %v1615
    %1617 = vmatmul.bf16.gmra.mxu0 %v1596
    %v1618 = vpop.f32.mrf.mxu0
    %v1619 = vadd.f32 %v1578, %v1618
    %v1620 = vpop.f32.mrf.mxu0
    %v1621 = vadd.f32 %v1580, %v1620
    %1622 = vmatmul.bf16.gmra.mxu0 %v1599
    %v1623 = vpop.f32.mrf.mxu0
    %v1624 = vadd.f32 %v1583, %v1623
    %v1625 = vpop.f32.mrf.mxu0
    %v1626 = vadd.f32 %v1585, %v1625
    %1627 = vmatmul.bf16.gmra.mxu0 %v1602
    %v1628 = vpop.f32.mrf.mxu0
    %v1629 = vadd.f32 %v1588, %v1628
    %v1630 = vpop.f32.mrf.mxu0
    %v1631 = vadd.f32 %v1590, %v1630
    %1632 = vdwg.mxu0
    %v1633 = vld [vmem:[%s5] sm:$0x1]
    %v1635 = vperm.slane %v1633, 0
    %v1637 = vadd.f32 %v1614, %v1635
    %v1638 = vadd.f32 %v1616, %v1635
    %v1639 = vadd.f32 %v1619, %v1635
    %v1640 = vadd.f32 %v1621, %v1635
    %v1641 = vadd.f32 %v1624, %v1635
    %v1642 = vadd.f32 %v1626, %v1635
    %v1643 = vadd.f32 %v1629, %v1635
    %v1644 = vadd.f32 %v1631, %v1635
    %v1645 = vadd.f32 %v287, %v1637
    %v1646 = vadd.f32 %v288, %v1638
    %v1647 = vadd.f32 %v289, %v1639
    %v1648 = vadd.f32 %v290, %v1640
    %v1649 = vadd.f32 %v291, %v1641
    %v1650 = vadd.f32 %v292, %v1642
    %v1651 = vadd.f32 %v293, %v1643
    %v1652 = vadd.f32 %v294, %v1644
    %v1653 = vld [vmem:[%s18] sm:$0x1]
    %v1654 = vld [vmem:[%s19] sm:$0x1]
    %v1655 = vsel %vm89, %v1645, 0.0
    %1656 = vadd.xlane.f32.xlu0 %v1655
    %v1657 = vpop.xlane.xlu0 %1656
    %v1658 = vsel %vm89, %v1646, 0.0
    %1659 = vadd.xlane.f32.xlu0 %v1658
    %v1660 = vpop.xlane.xlu0 %1659
    %v1661 = vsel %vm89, %v1647, 0.0
    %1662 = vadd.xlane.f32.xlu0 %v1661
    %v1663 = vpop.xlane.xlu0 %1662
    %v1664 = vsel %vm89, %v1648, 0.0
    %1665 = vadd.xlane.f32.xlu0 %v1664
    %v1666 = vpop.xlane.xlu0 %1665
    %v1667 = vsel %vm89, %v1649, 0.0
    %1668 = vadd.xlane.f32.xlu0 %v1667
    %v1669 = vpop.xlane.xlu0 %1668
    %v1670 = vsel %vm89, %v1650, 0.0
    %1671 = vadd.xlane.f32.xlu0 %v1670
    %v1672 = vpop.xlane.xlu0 %1671
    %v1673 = vsel %vm89, %v1651, 0.0
    %1674 = vadd.xlane.f32.xlu0 %v1673
    %v1675 = vpop.xlane.xlu0 %1674
    %v1676 = vsel %vm89, %v1652, 0.0
    %1677 = vadd.xlane.f32.xlu0 %v1676
    %v1678 = vpop.xlane.xlu0 %1677
    %v1679 = vmul.f32 %v1657, %v120
    %v1680 = vmul.f32 %v1660, %v120
    %v1681 = vmul.f32 %v1663, %v120
    %v1682 = vmul.f32 %v1666, %v120
    %v1683 = vmul.f32 %v1669, %v120
    %v1684 = vmul.f32 %v1672, %v120
    %v1685 = vmul.f32 %v1675, %v120
    %v1686 = vmul.f32 %v1678, %v120
    %v1687 = vsub.f32 %v1645, %v1679
    %v1688 = vsub.f32 %v1646, %v1680
    %v1689 = vsub.f32 %v1647, %v1681
    %v1690 = vsub.f32 %v1648, %v1682
    %v1691 = vsub.f32 %v1649, %v1683
    %v1692 = vsub.f32 %v1650, %v1684
    %v1693 = vsub.f32 %v1651, %v1685
    %v1694 = vsub.f32 %v1652, %v1686
    %v1695 = vmul.f32 %v1687, %v1687
    %v1696 = vmul.f32 %v1688, %v1688
    %v1697 = vmul.f32 %v1689, %v1689
    %v1698 = vmul.f32 %v1690, %v1690
    %v1699 = vmul.f32 %v1691, %v1691
    %v1700 = vmul.f32 %v1692, %v1692
    %v1701 = vmul.f32 %v1693, %v1693
    %v1702 = vmul.f32 %v1694, %v1694
    %v1703 = vsel %vm89, %v1695, 0.0
    %1704 = vadd.xlane.f32.xlu0 %v1703
    %v1705 = vpop.xlane.xlu0 %1704
    %v1706 = vsel %vm89, %v1696, 0.0
    %1707 = vadd.xlane.f32.xlu0 %v1706
    %v1708 = vpop.xlane.xlu0 %1707
    %v1709 = vsel %vm89, %v1697, 0.0
    %1710 = vadd.xlane.f32.xlu0 %v1709
    %v1711 = vpop.xlane.xlu0 %1710
    %v1712 = vsel %vm89, %v1698, 0.0
    %1713 = vadd.xlane.f32.xlu0 %v1712
    %v1714 = vpop.xlane.xlu0 %1713
    %v1715 = vsel %vm89, %v1699, 0.0
    %1716 = vadd.xlane.f32.xlu0 %v1715
    %v1717 = vpop.xlane.xlu0 %1716
    %v1718 = vsel %vm89, %v1700, 0.0
    %1719 = vadd.xlane.f32.xlu0 %v1718
    %v1720 = vpop.xlane.xlu0 %1719
    %v1721 = vsel %vm89, %v1701, 0.0
    %1722 = vadd.xlane.f32.xlu0 %v1721
    %v1723 = vpop.xlane.xlu0 %1722
    %v1724 = vsel %vm89, %v1702, 0.0
    %1725 = vadd.xlane.f32.xlu0 %v1724
    %v1726 = vpop.xlane.xlu0 %1725
    %v1727 = vmul.f32 %v1705, %v120
    %v1728 = vmul.f32 %v1708, %v120
    %v1729 = vmul.f32 %v1711, %v120
    %v1730 = vmul.f32 %v1714, %v120
    %v1731 = vmul.f32 %v1717, %v120
    %v1732 = vmul.f32 %v1720, %v120
    %v1733 = vmul.f32 %v1723, %v120
    %v1734 = vmul.f32 %v1726, %v120
    %v1735 = vadd.f32 %v1727, 1e-12
    %v1736 = vadd.f32 %v1728, 1e-12
    %v1737 = vadd.f32 %v1729, 1e-12
    %v1738 = vadd.f32 %v1730, 1e-12
    %v1739 = vadd.f32 %v1731, 1e-12
    %v1740 = vadd.f32 %v1732, 1e-12
    %v1741 = vadd.f32 %v1733, 1e-12
    %v1742 = vadd.f32 %v1734, 1e-12
    %v1743 = vrsqrt.pop %v1735
    %v1744 = vmul.f32 %v1743, %v1735
    %v1745 = vmul.f32 %v1744, %v1743
    %v1746 = vmul.f32 0.5, %v1745
    %v1747 = vsub.f32 1.5, %v1746
    %v1748 = vmul.f32 %v1743, %v1747
    %vm1749 = vweird.f32 %v1735
    %vm1750 = vweird.f32 %v1743
    %vm1751 = vmor %vm1749, %vm1750
    %v1752 = vsel %vm1751, %v1743, %v1748
    %v1753 = vrsqrt.pop %v1736
    %v1754 = vmul.f32 %v1753, %v1736
    %v1755 = vmul.f32 %v1754, %v1753
    %v1756 = vmul.f32 0.5, %v1755
    %v1757 = vsub.f32 1.5, %v1756
    %v1758 = vmul.f32 %v1753, %v1757
    %vm1759 = vweird.f32 %v1736
    %vm1760 = vweird.f32 %v1753
    %vm1761 = vmor %vm1759, %vm1760
    %v1762 = vsel %vm1761, %v1753, %v1758
    %v1763 = vrsqrt.pop %v1737
    %v1764 = vmul.f32 %v1763, %v1737
    %v1765 = vmul.f32 %v1764, %v1763
    %v1766 = vmul.f32 0.5, %v1765
    %v1767 = vsub.f32 1.5, %v1766
    %v1768 = vmul.f32 %v1763, %v1767
    %vm1769 = vweird.f32 %v1737
    %vm1770 = vweird.f32 %v1763
    %vm1771 = vmor %vm1769, %vm1770
    %v1772 = vsel %vm1771, %v1763, %v1768
    %v1773 = vrsqrt.pop %v1738
    %v1774 = vmul.f32 %v1773, %v1738
    %v1775 = vmul.f32 %v1774, %v1773
    %v1776 = vmul.f32 0.5, %v1775
    %v1777 = vsub.f32 1.5, %v1776
    %v1778 = vmul.f32 %v1773, %v1777
    %vm1779 = vweird.f32 %v1738
    %vm1780 = vweird.f32 %v1773
    %vm1781 = vmor %vm1779, %vm1780
    %v1782 = vsel %vm1781, %v1773, %v1778
    %v1783 = vrsqrt.pop %v1739
    %v1784 = vmul.f32 %v1783, %v1739
    %v1785 = vmul.f32 %v1784, %v1783
    %v1786 = vmul.f32 0.5, %v1785
    %v1787 = vsub.f32 1.5, %v1786
    %v1788 = vmul.f32 %v1783, %v1787
    %vm1789 = vweird.f32 %v1739
    %vm1790 = vweird.f32 %v1783
    %vm1791 = vmor %vm1789, %vm1790
    %v1792 = vsel %vm1791, %v1783, %v1788
    %v1793 = vrsqrt.pop %v1740
    %v1794 = vmul.f32 %v1793, %v1740
    %v1795 = vmul.f32 %v1794, %v1793
    %v1796 = vmul.f32 0.5, %v1795
    %v1797 = vsub.f32 1.5, %v1796
    %v1798 = vmul.f32 %v1793, %v1797
    %vm1799 = vweird.f32 %v1740
    %vm1800 = vweird.f32 %v1793
    %vm1801 = vmor %vm1799, %vm1800
    %v1802 = vsel %vm1801, %v1793, %v1798
    %v1803 = vrsqrt.pop %v1741
    %v1804 = vmul.f32 %v1803, %v1741
    %v1805 = vmul.f32 %v1804, %v1803
    %v1806 = vmul.f32 0.5, %v1805
    %v1807 = vsub.f32 1.5, %v1806
    %v1808 = vmul.f32 %v1803, %v1807
    %vm1809 = vweird.f32 %v1741
    %vm1810 = vweird.f32 %v1803
    %vm1811 = vmor %vm1809, %vm1810
    %v1812 = vsel %vm1811, %v1803, %v1808
    %v1813 = vrsqrt.pop %v1742
    %v1814 = vmul.f32 %v1813, %v1742
    %v1815 = vmul.f32 %v1814, %v1813
    %v1816 = vmul.f32 0.5, %v1815
    %v1817 = vsub.f32 1.5, %v1816
    %v1818 = vmul.f32 %v1813, %v1817
    %vm1819 = vweird.f32 %v1742
    %vm1820 = vweird.f32 %v1813
    %vm1821 = vmor %vm1819, %vm1820
    %v1822 = vsel %vm1821, %v1813, %v1818
    %v1823 = vmul.f32 %v1687, %v1752
    %v1824 = vmul.f32 %v1688, %v1762
    %v1825 = vmul.f32 %v1689, %v1772
    %v1826 = vmul.f32 %v1690, %v1782
    %v1827 = vmul.f32 %v1691, %v1792
    %v1828 = vmul.f32 %v1692, %v1802
    %v1829 = vmul.f32 %v1693, %v1812
    %v1830 = vmul.f32 %v1694, %v1822
    %v1832 = vperm.slane %v1653, 0
    %v1834 = vmul.f32 %v1823, %v1832
    %v1835 = vmul.f32 %v1824, %v1832
    %v1836 = vmul.f32 %v1825, %v1832
    %v1837 = vmul.f32 %v1826, %v1832
    %v1838 = vmul.f32 %v1827, %v1832
    %v1839 = vmul.f32 %v1828, %v1832
    %v1840 = vmul.f32 %v1829, %v1832
    %v1841 = vmul.f32 %v1830, %v1832
    %v1843 = vperm.slane %v1654, 0
    %v1845 = vadd.f32 %v1834, %v1843
    %v1846 = vadd.f32 %v1835, %v1843
    %v1847 = vadd.f32 %v1836, %v1843
    %v1848 = vadd.f32 %v1837, %v1843
    %v1849 = vadd.f32 %v1838, %v1843
    %v1850 = vadd.f32 %v1839, %v1843
    %v1851 = vadd.f32 %v1840, %v1843
    %v1852 = vadd.f32 %v1841, %v1843
    %v1853 = vld [vmem:[%s6] sm:$0xff]
    %v1854 = vld [vmem:[%s6 + $0x8] sm:$0xff]
    %v1855 = vld [vmem:[%s6 + $0x10] sm:$0xff]
    %v1856 = vld [vmem:[%s6 + $0x18] sm:$0xff]
    %v1857 = vpack.c.bf16 %v1846, %v1845
    %v1858 = vpack.c.bf16 %v1848, %v1847
    %v1859 = vpack.c.bf16 %v1850, %v1849
    %v1860 = vpack.c.bf16 %v1852, %v1851
    %v1861 = vpack.c.bf16 %v1854, %v1853
    %v1862 = vpack.c.bf16 %v1856, %v1855
    %v1863 = vld [vmem:[%s7] sm:$0x1]
    %v1865 = vperm.slane %v1863, 0
    %v1868 = vsel %vm89, %v1857, 0
    %v1871 = vsel %vm89, %v1858, 0
    %v1874 = vsel %vm89, %v1859, 0
    %v1877 = vsel %vm89, %v1860, 0
    %1879 = vmatpush.bf16.msra.mxu0 0
    %1880 = vmatpush.bf16.msra.mxu0 0
    %1881 = vmatpush.bf16.msra.mxu0 0
    %1882 = vmatpush.bf16.msra.mxu0 0
    %1883 = vmatpush.bf16.msra.mxu0 0
    %1884 = vmatpush.bf16.msra.mxu0 0
    %1885 = vmatpush.bf16.msra.mxu0 %v1862
    %1886 = vmatpush.bf16.msra.mxu0 %v1861
    %1887 = vmatmul.bf16.gmra.mxu0 %v1868
    %v1888 = vpop.f32.mrf.mxu0
    %v1889 = vadd.f32 %v1865, %v1888
    %v1890 = vpop.f32.mrf.mxu0
    %v1891 = vadd.f32 %v1865, %v1890
    %1892 = vmatmul.bf16.gmra.mxu0 %v1871
    %v1893 = vpop.f32.mrf.mxu0
    %v1894 = vadd.f32 %v1865, %v1893
    %v1895 = vpop.f32.mrf.mxu0
    %v1896 = vadd.f32 %v1865, %v1895
    %1897 = vmatmul.bf16.gmra.mxu0 %v1874
    %v1898 = vpop.f32.mrf.mxu0
    %v1899 = vadd.f32 %v1865, %v1898
    %v1900 = vpop.f32.mrf.mxu0
    %v1901 = vadd.f32 %v1865, %v1900
    %1902 = vmatmul.bf16.gmra.mxu0 %v1877
    %v1903 = vpop.f32.mrf.mxu0
    %v1904 = vadd.f32 %v1865, %v1903
    %v1905 = vpop.f32.mrf.mxu0
    %v1906 = vadd.f32 %v1865, %v1905
    %1907 = vdwg.mxu0
    %v1908 = vmul.f32 %v1889, %v1889
    %v1909 = vmul.f32 %v1891, %v1891
    %v1910 = vmul.f32 %v1894, %v1894
    %v1911 = vmul.f32 %v1896, %v1896
    %v1912 = vmul.f32 %v1899, %v1899
    %v1913 = vmul.f32 %v1901, %v1901
    %v1914 = vmul.f32 %v1904, %v1904
    %v1915 = vmul.f32 %v1906, %v1906
    %v1916 = vmul.f32 %v1889, %v1908
    %v1917 = vmul.f32 %v1891, %v1909
    %v1918 = vmul.f32 %v1894, %v1910
    %v1919 = vmul.f32 %v1896, %v1911
    %v1920 = vmul.f32 %v1899, %v1912
    %v1921 = vmul.f32 %v1901, %v1913
    %v1922 = vmul.f32 %v1904, %v1914
    %v1923 = vmul.f32 %v1906, %v1915
    %v1924 = vmul.f32 %v1916, 0.044715
    %v1925 = vmul.f32 %v1917, 0.044715
    %v1926 = vmul.f32 %v1918, 0.044715
    %v1927 = vmul.f32 %v1919, 0.044715
    %v1928 = vmul.f32 %v1920, 0.044715
    %v1929 = vmul.f32 %v1921, 0.044715
    %v1930 = vmul.f32 %v1922, 0.044715
    %v1931 = vmul.f32 %v1923, 0.044715
    %v1932 = vadd.f32 %v1889, %v1924
    %v1933 = vadd.f32 %v1891, %v1925
    %v1934 = vadd.f32 %v1894, %v1926
    %v1935 = vadd.f32 %v1896, %v1927
    %v1936 = vadd.f32 %v1899, %v1928
    %v1937 = vadd.f32 %v1901, %v1929
    %v1938 = vadd.f32 %v1904, %v1930
    %v1939 = vadd.f32 %v1906, %v1931
    %v1940 = vmul.f32 %v1932, 0.7978846
    %v1941 = vmul.f32 %v1933, 0.7978846
    %v1942 = vmul.f32 %v1934, 0.7978846
    %v1943 = vmul.f32 %v1935, 0.7978846
    %v1944 = vmul.f32 %v1936, 0.7978846
    %v1945 = vmul.f32 %v1937, 0.7978846
    %v1946 = vmul.f32 %v1938, 0.7978846
    %v1947 = vmul.f32 %v1939, 0.7978846
    %v1948 = vtanh.pop %v1940
    %v1949 = vtanh.pop %v1941
    %v1950 = vtanh.pop %v1942
    %v1951 = vtanh.pop %v1943
    %v1952 = vtanh.pop %v1944
    %v1953 = vtanh.pop %v1945
    %v1954 = vtanh.pop %v1946
    %v1955 = vtanh.pop %v1947
    %v1956 = vadd.f32 %v1948, 1.0
    %v1957 = vadd.f32 %v1949, 1.0
    %v1958 = vadd.f32 %v1950, 1.0
    %v1959 = vadd.f32 %v1951, 1.0
    %v1960 = vadd.f32 %v1952, 1.0
    %v1961 = vadd.f32 %v1953, 1.0
    %v1962 = vadd.f32 %v1954, 1.0
    %v1963 = vadd.f32 %v1955, 1.0
    %v1964 = vmul.f32 %v1956, 0.5
    %v1965 = vmul.f32 %v1957, 0.5
    %v1966 = vmul.f32 %v1958, 0.5
    %v1967 = vmul.f32 %v1959, 0.5
    %v1968 = vmul.f32 %v1960, 0.5
    %v1969 = vmul.f32 %v1961, 0.5
    %v1970 = vmul.f32 %v1962, 0.5
    %v1971 = vmul.f32 %v1963, 0.5
    %v1972 = vmul.f32 %v1889, %v1964
    %v1973 = vmul.f32 %v1891, %v1965
    %v1974 = vmul.f32 %v1894, %v1966
    %v1975 = vmul.f32 %v1896, %v1967
    %v1976 = vmul.f32 %v1899, %v1968
    %v1977 = vmul.f32 %v1901, %v1969
    %v1978 = vmul.f32 %v1904, %v1970
    %v1979 = vmul.f32 %v1906, %v1971
    %v1980 = vld [vmem:[%s8] sm:$0xff]
    %v1981 = vld [vmem:[%s8 + $0x8] sm:$0xff]
    %v1982 = vld [vmem:[%s8 + $0x10] sm:$0xff]
    %v1983 = vld [vmem:[%s8 + $0x18] sm:$0xff]
    %v1984 = vld [vmem:[%s8 + $0x20] sm:$0xff]
    %v1985 = vld [vmem:[%s8 + $0x28] sm:$0xff]
    %v1986 = vld [vmem:[%s8 + $0x30] sm:$0xff]
    %v1987 = vld [vmem:[%s8 + $0x38] sm:$0xff]
    %v1988 = vld [vmem:[%s8 + $0x40] sm:$0xff]
    %v1989 = vld [vmem:[%s8 + $0x48] sm:$0xff]
    %v1990 = vld [vmem:[%s8 + $0x50] sm:$0xff]
    %v1991 = vld [vmem:[%s8 + $0x58] sm:$0xff]
    %v1992 = vld [vmem:[%s8 + $0x60] sm:$0xff]
    %v1993 = vld [vmem:[%s8 + $0x68] sm:$0xff]
    %v1994 = vld [vmem:[%s8 + $0x70] sm:$0xff]
    %v1995 = vld [vmem:[%s8 + $0x78] sm:$0xff]
    %v1996 = vpack.c.bf16 %v1973, %v1972
    %v1997 = vpack.c.bf16 %v1975, %v1974
    %v1998 = vpack.c.bf16 %v1977, %v1976
    %v1999 = vpack.c.bf16 %v1979, %v1978
    %v2000 = vpack.c.bf16 %v1981, %v1980
    %v2001 = vpack.c.bf16 %v1983, %v1982
    %v2002 = vpack.c.bf16 %v1985, %v1984
    %v2003 = vpack.c.bf16 %v1987, %v1986
    %v2004 = vpack.c.bf16 %v1989, %v1988
    %v2005 = vpack.c.bf16 %v1991, %v1990
    %v2006 = vpack.c.bf16 %v1993, %v1992
    %v2007 = vpack.c.bf16 %v1995, %v1994
    %v2008 = vld [vmem:[%s9] sm:$0x1]
    %v2010 = vperm.slane %v2008, 0
    %2012 = vmatpush.bf16.msra.mxu0 %v2007
    %2013 = vmatpush.bf16.msra.mxu0 %v2006
    %2014 = vmatpush.bf16.msra.mxu0 %v2005
    %2015 = vmatpush.bf16.msra.mxu0 %v2004
    %2016 = vmatpush.bf16.msra.mxu0 %v2003
    %2017 = vmatpush.bf16.msra.mxu0 %v2002
    %2018 = vmatpush.bf16.msra.mxu0 %v2001
    %2019 = vmatpush.bf16.msra.mxu0 %v2000
    %2020 = vmatmul.bf16.gmra.mxu0 %v1996
    %v2021 = vpop.f32.mrf.mxu0
    %v2022 = vadd.f32 %v2010, %v2021
    %v2023 = vpop.f32.mrf.mxu0
    %v2024 = vadd.f32 %v2010, %v2023
    %2025 = vmatmul.bf16.gmra.mxu0 %v1997
    %v2026 = vpop.f32.mrf.mxu0
    %v2027 = vadd.f32 %v2010, %v2026
    %v2028 = vpop.f32.mrf.mxu0
    %v2029 = vadd.f32 %v2010, %v2028
    %2030 = vmatmul.bf16.gmra.mxu0 %v1998
    %v2031 = vpop.f32.mrf.mxu0
    %v2032 = vadd.f32 %v2010, %v2031
    %v2033 = vpop.f32.mrf.mxu0
    %v2034 = vadd.f32 %v2010, %v2033
    %2035 = vmatmul.bf16.gmra.mxu0 %v1999
    %v2036 = vpop.f32.mrf.mxu0
    %v2037 = vadd.f32 %v2010, %v2036
    %v2038 = vpop.f32.mrf.mxu0
    %v2039 = vadd.f32 %v2010, %v2038
    %2040 = vdwg.mxu0
    %v2041 = vadd.f32 %v1845, %v2022
    %v2042 = vadd.f32 %v1846, %v2024
    %v2043 = vadd.f32 %v1847, %v2027
    %v2044 = vadd.f32 %v1848, %v2029
    %v2045 = vadd.f32 %v1849, %v2032
    %v2046 = vadd.f32 %v1850, %v2034
    %v2047 = vadd.f32 %v1851, %v2037
    %v2048 = vadd.f32 %v1852, %v2039
    %v2049 = vld [vmem:[%s20] sm:$0x1]
    %v2050 = vld [vmem:[%s21] sm:$0x1]
    %v2051 = vsel %vm89, %v2041, 0.0
    %2052 = vadd.xlane.f32.xlu0 %v2051
    %v2053 = vpop.xlane.xlu0 %2052
    %v2054 = vsel %vm89, %v2042, 0.0
    %2055 = vadd.xlane.f32.xlu0 %v2054
    %v2056 = vpop.xlane.xlu0 %2055
    %v2057 = vsel %vm89, %v2043, 0.0
    %2058 = vadd.xlane.f32.xlu0 %v2057
    %v2059 = vpop.xlane.xlu0 %2058
    %v2060 = vsel %vm89, %v2044, 0.0
    %2061 = vadd.xlane.f32.xlu0 %v2060
    %v2062 = vpop.xlane.xlu0 %2061
    %v2063 = vsel %vm89, %v2045, 0.0
    %2064 = vadd.xlane.f32.xlu0 %v2063
    %v2065 = vpop.xlane.xlu0 %2064
    %v2066 = vsel %vm89, %v2046, 0.0
    %2067 = vadd.xlane.f32.xlu0 %v2066
    %v2068 = vpop.xlane.xlu0 %2067
    %v2069 = vsel %vm89, %v2047, 0.0
    %2070 = vadd.xlane.f32.xlu0 %v2069
    %v2071 = vpop.xlane.xlu0 %2070
    %v2072 = vsel %vm89, %v2048, 0.0
    %2073 = vadd.xlane.f32.xlu0 %v2072
    %v2074 = vpop.xlane.xlu0 %2073
    %v2075 = vmul.f32 %v2053, %v120
    %v2076 = vmul.f32 %v2056, %v120
    %v2077 = vmul.f32 %v2059, %v120
    %v2078 = vmul.f32 %v2062, %v120
    %v2079 = vmul.f32 %v2065, %v120
    %v2080 = vmul.f32 %v2068, %v120
    %v2081 = vmul.f32 %v2071, %v120
    %v2082 = vmul.f32 %v2074, %v120
    %v2083 = vsub.f32 %v2041, %v2075
    %v2084 = vsub.f32 %v2042, %v2076
    %v2085 = vsub.f32 %v2043, %v2077
    %v2086 = vsub.f32 %v2044, %v2078
    %v2087 = vsub.f32 %v2045, %v2079
    %v2088 = vsub.f32 %v2046, %v2080
    %v2089 = vsub.f32 %v2047, %v2081
    %v2090 = vsub.f32 %v2048, %v2082
    %v2091 = vmul.f32 %v2083, %v2083
    %v2092 = vmul.f32 %v2084, %v2084
    %v2093 = vmul.f32 %v2085, %v2085
    %v2094 = vmul.f32 %v2086, %v2086
    %v2095 = vmul.f32 %v2087, %v2087
    %v2096 = vmul.f32 %v2088, %v2088
    %v2097 = vmul.f32 %v2089, %v2089
    %v2098 = vmul.f32 %v2090, %v2090
    %v2099 = vsel %vm89, %v2091, 0.0
    %2100 = vadd.xlane.f32.xlu0 %v2099
    %v2101 = vpop.xlane.xlu0 %2100
    %v2102 = vsel %vm89, %v2092, 0.0
    %2103 = vadd.xlane.f32.xlu0 %v2102
    %v2104 = vpop.xlane.xlu0 %2103
    %v2105 = vsel %vm89, %v2093, 0.0
    %2106 = vadd.xlane.f32.xlu0 %v2105
    %v2107 = vpop.xlane.xlu0 %2106
    %v2108 = vsel %vm89, %v2094, 0.0
    %2109 = vadd.xlane.f32.xlu0 %v2108
    %v2110 = vpop.xlane.xlu0 %2109
    %v2111 = vsel %vm89, %v2095, 0.0
    %2112 = vadd.xlane.f32.xlu0 %v2111
    %v2113 = vpop.xlane.xlu0 %2112
    %v2114 = vsel %vm89, %v2096, 0.0
    %2115 = vadd.xlane.f32.xlu0 %v2114
    %v2116 = vpop.xlane.xlu0 %2115
    %v2117 = vsel %vm89, %v2097, 0.0
    %2118 = vadd.xlane.f32.xlu0 %v2117
    %v2119 = vpop.xlane.xlu0 %2118
    %v2120 = vsel %vm89, %v2098, 0.0
    %2121 = vadd.xlane.f32.xlu0 %v2120
    %v2122 = vpop.xlane.xlu0 %2121
    %v2123 = vmul.f32 %v2101, %v120
    %v2124 = vmul.f32 %v2104, %v120
    %v2125 = vmul.f32 %v2107, %v120
    %v2126 = vmul.f32 %v2110, %v120
    %v2127 = vmul.f32 %v2113, %v120
    %v2128 = vmul.f32 %v2116, %v120
    %v2129 = vmul.f32 %v2119, %v120
    %v2130 = vmul.f32 %v2122, %v120
    %v2131 = vadd.f32 %v2123, 1e-12
    %v2132 = vadd.f32 %v2124, 1e-12
    %v2133 = vadd.f32 %v2125, 1e-12
    %v2134 = vadd.f32 %v2126, 1e-12
    %v2135 = vadd.f32 %v2127, 1e-12
    %v2136 = vadd.f32 %v2128, 1e-12
    %v2137 = vadd.f32 %v2129, 1e-12
    %v2138 = vadd.f32 %v2130, 1e-12
    %v2139 = vrsqrt.pop %v2131
    %v2140 = vmul.f32 %v2139, %v2131
    %v2141 = vmul.f32 %v2140, %v2139
    %v2142 = vmul.f32 0.5, %v2141
    %v2143 = vsub.f32 1.5, %v2142
    %v2144 = vmul.f32 %v2139, %v2143
    %vm2145 = vweird.f32 %v2131
    %vm2146 = vweird.f32 %v2139
    %vm2147 = vmor %vm2145, %vm2146
    %v2148 = vsel %vm2147, %v2139, %v2144
    %v2149 = vrsqrt.pop %v2132
    %v2150 = vmul.f32 %v2149, %v2132
    %v2151 = vmul.f32 %v2150, %v2149
    %v2152 = vmul.f32 0.5, %v2151
    %v2153 = vsub.f32 1.5, %v2152
    %v2154 = vmul.f32 %v2149, %v2153
    %vm2155 = vweird.f32 %v2132
    %vm2156 = vweird.f32 %v2149
    %vm2157 = vmor %vm2155, %vm2156
    %v2158 = vsel %vm2157, %v2149, %v2154
    %v2159 = vrsqrt.pop %v2133
    %v2160 = vmul.f32 %v2159, %v2133
    %v2161 = vmul.f32 %v2160, %v2159
    %v2162 = vmul.f32 0.5, %v2161
    %v2163 = vsub.f32 1.5, %v2162
    %v2164 = vmul.f32 %v2159, %v2163
    %vm2165 = vweird.f32 %v2133
    %vm2166 = vweird.f32 %v2159
    %vm2167 = vmor %vm2165, %vm2166
    %v2168 = vsel %vm2167, %v2159, %v2164
    %v2169 = vrsqrt.pop %v2134
    %v2170 = vmul.f32 %v2169, %v2134
    %v2171 = vmul.f32 %v2170, %v2169
    %v2172 = vmul.f32 0.5, %v2171
    %v2173 = vsub.f32 1.5, %v2172
    %v2174 = vmul.f32 %v2169, %v2173
    %vm2175 = vweird.f32 %v2134
    %vm2176 = vweird.f32 %v2169
    %vm2177 = vmor %vm2175, %vm2176
    %v2178 = vsel %vm2177, %v2169, %v2174
    %v2179 = vrsqrt.pop %v2135
    %v2180 = vmul.f32 %v2179, %v2135
    %v2181 = vmul.f32 %v2180, %v2179
    %v2182 = vmul.f32 0.5, %v2181
    %v2183 = vsub.f32 1.5, %v2182
    %v2184 = vmul.f32 %v2179, %v2183
    %vm2185 = vweird.f32 %v2135
    %vm2186 = vweird.f32 %v2179
    %vm2187 = vmor %vm2185, %vm2186
    %v2188 = vsel %vm2187, %v2179, %v2184
    %v2189 = vrsqrt.pop %v2136
    %v2190 = vmul.f32 %v2189, %v2136
    %v2191 = vmul.f32 %v2190, %v2189
    %v2192 = vmul.f32 0.5, %v2191
    %v2193 = vsub.f32 1.5, %v2192
    %v2194 = vmul.f32 %v2189, %v2193
    %vm2195 = vweird.f32 %v2136
    %vm2196 = vweird.f32 %v2189
    %vm2197 = vmor %vm2195, %vm2196
    %v2198 = vsel %vm2197, %v2189, %v2194
    %v2199 = vrsqrt.pop %v2137
    %v2200 = vmul.f32 %v2199, %v2137
    %v2201 = vmul.f32 %v2200, %v2199
    %v2202 = vmul.f32 0.5, %v2201
    %v2203 = vsub.f32 1.5, %v2202
    %v2204 = vmul.f32 %v2199, %v2203
    %vm2205 = vweird.f32 %v2137
    %vm2206 = vweird.f32 %v2199
    %vm2207 = vmor %vm2205, %vm2206
    %v2208 = vsel %vm2207, %v2199, %v2204
    %v2209 = vrsqrt.pop %v2138
    %v2210 = vmul.f32 %v2209, %v2138
    %v2211 = vmul.f32 %v2210, %v2209
    %v2212 = vmul.f32 0.5, %v2211
    %v2213 = vsub.f32 1.5, %v2212
    %v2214 = vmul.f32 %v2209, %v2213
    %vm2215 = vweird.f32 %v2138
    %vm2216 = vweird.f32 %v2209
    %vm2217 = vmor %vm2215, %vm2216
    %v2218 = vsel %vm2217, %v2209, %v2214
    %v2219 = vmul.f32 %v2083, %v2148
    %v2220 = vmul.f32 %v2084, %v2158
    %v2221 = vmul.f32 %v2085, %v2168
    %v2222 = vmul.f32 %v2086, %v2178
    %v2223 = vmul.f32 %v2087, %v2188
    %v2224 = vmul.f32 %v2088, %v2198
    %v2225 = vmul.f32 %v2089, %v2208
    %v2226 = vmul.f32 %v2090, %v2218
    %v2228 = vperm.slane %v2049, 0
    %v2230 = vmul.f32 %v2219, %v2228
    %v2231 = vmul.f32 %v2220, %v2228
    %v2232 = vmul.f32 %v2221, %v2228
    %v2233 = vmul.f32 %v2222, %v2228
    %v2234 = vmul.f32 %v2223, %v2228
    %v2235 = vmul.f32 %v2224, %v2228
    %v2236 = vmul.f32 %v2225, %v2228
    %v2237 = vmul.f32 %v2226, %v2228
    %v2239 = vperm.slane %v2050, 0
    %v2241 = vadd.f32 %v2230, %v2239
    %v2242 = vadd.f32 %v2231, %v2239
    %v2243 = vadd.f32 %v2232, %v2239
    %v2244 = vadd.f32 %v2233, %v2239
    %v2245 = vadd.f32 %v2234, %v2239
    %v2246 = vadd.f32 %v2235, %v2239
    %v2247 = vadd.f32 %v2236, %v2239
    %v2248 = vadd.f32 %v2237, %v2239
    %v2249 = vld [vmem:[%s10] sm:$0xff]
    %v2250 = vld [vmem:[%s10 + $0x8] sm:$0xff]
    %v2251 = vld [vmem:[%s10 + $0x10] sm:$0xff]
    %v2252 = vld [vmem:[%s10 + $0x18] sm:$0xff]
    %v2253 = vpack.c.bf16 %v2241, %v2241
    %v2254 = vpack.c.bf16 %v2242, %v2242
    %v2255 = vpack.c.bf16 %v2243, %v2243
    %v2256 = vpack.c.bf16 %v2244, %v2244
    %v2257 = vpack.c.bf16 %v2245, %v2245
    %v2258 = vpack.c.bf16 %v2246, %v2246
    %v2259 = vpack.c.bf16 %v2247, %v2247
    %v2260 = vpack.c.bf16 %v2248, %v2248
    %v2261 = vpack.c.bf16 %v2250, %v2249
    %v2262 = vpack.c.bf16 %v2252, %v2251
    %v2263 = vld [vmem:[%s11] sm:$0x1]
    %v2265 = vperm.slane %v2263, 0
    %v2275 = vunpack.c.l.b16 %v2253
    %v2276 = vunpack.c.l.b16 %v2254
    %v2277 = vunpack.c.l.b16 %v2255
    %v2278 = vunpack.c.l.b16 %v2256
    %v2279 = vunpack.c.l.b16 %v2257
    %v2280 = vunpack.c.l.b16 %v2258
    %v2281 = vunpack.c.l.b16 %v2259
    %v2282 = vunpack.c.l.b16 %v2260
    %v2283 = vrot.slane %v2276, 7
    %vm2284 = vcmask 1041409
    %v2285 = vsel %vm2284, %v2283, %v2275
    %v2286 = vrot.slane %v2277, 6
    %vm2287 = vcmask 1042434
    %v2288 = vsel %vm2287, %v2286, %v2285
    %v2289 = vrot.slane %v2278, 5
    %vm2290 = vcmask 1043459
    %v2291 = vsel %vm2290, %v2289, %v2288
    %v2292 = vrot.slane %v2279, 4
    %vm2293 = vcmask 1044484
    %v2294 = vsel %vm2293, %v2292, %v2291
    %v2295 = vrot.slane %v2280, 3
    %vm2296 = vcmask 1045509
    %v2297 = vsel %vm2296, %v2295, %v2294
    %v2298 = vrot.slane %v2281, 2
    %vm2299 = vcmask 1046534
    %v2300 = vsel %vm2299, %v2298, %v2297
    %v2301 = vrot.slane %v2282, 1
    %vm2302 = vcmask 1047559
    %v2303 = vsel %vm2302, %v2301, %v2300
    %v2304 = vpack.c.b16 %v2303, %v2303
    %v2306 = vsel %vm89, %v2304, 0
    %2308 = vmatpush.bf16.msra.mxu0 0
    %2309 = vmatpush.bf16.msra.mxu0 0
    %2310 = vmatpush.bf16.msra.mxu0 0
    %2311 = vmatpush.bf16.msra.mxu0 0
    %2312 = vmatpush.bf16.msra.mxu0 0
    %2313 = vmatpush.bf16.msra.mxu0 0
    %2314 = vmatpush.bf16.msra.mxu0 %v2262
    %2315 = vmatpush.bf16.msra.mxu0 %v2261
    %2316 = vmatmul.bf16.gmra.mxu0 %v2306
    %v2317 = vpop.f32.mrf.mxu0
    %v2318 = vadd.f32 %v2265, %v2317
    %v2319 = vpop.f32.mrf.mxu0
    %2320 = vdwg.mxu0
    %v2321 = vtanh.pop %v2318
    %2322 = vst.msk [vmem:[#allocation5] sm:$0xff] %vm89, %v2321
    %v2323 = vld [vmem:[%s12] sm:$0xff]
    %v2324 = vld [vmem:[%s12 + $0x8] sm:$0xff]
    %v2325 = vld [vmem:[%s12 + $0x10] sm:$0xff]
    %v2326 = vld [vmem:[%s12 + $0x18] sm:$0xff]
    %v2327 = vpack.c.bf16 %v2321, %v2321
    %v2328 = vpack.c.bf16 %v2324, %v2323
    %v2329 = vpack.c.bf16 %v2326, %v2325
    %v2330 = vld [vmem:[%s13] sm:$0x1]
    %v2332 = vperm.slane %v2330, 0
    %v2335 = vsel %vm89, %v2327, 0
    %2337 = vmatpush.bf16.msra.mxu0 0
    %2338 = vmatpush.bf16.msra.mxu0 0
    %2339 = vmatpush.bf16.msra.mxu0 0
    %2340 = vmatpush.bf16.msra.mxu0 0
    %2341 = vmatpush.bf16.msra.mxu0 0
    %2342 = vmatpush.bf16.msra.mxu0 0
    %2343 = vmatpush.bf16.msra.mxu0 %v2329
    %2344 = vmatpush.bf16.msra.mxu0 %v2328
    %2345 = vmatmul.bf16.gmra.mxu0 %v2335
    %v2346 = vpop.f32.mrf.mxu0
    %v2347 = vadd.f32 %v2332, %v2346
    %v2348 = vpop.f32.mrf.mxu0
    %2349 = vdwg.mxu0
    %vm2350 = vcmp.ge.f32.partialorder %v2347, 0.0
    %v2351 = vmul.f32 %v2347, 0.2
    %v2352 = vsel %vm2350, %v2347, %v2351
    %v2353 = vld [vmem:[%s14] sm:$0x1]
    %v2354 = vpack.c.bf16 %v2353, %v2353
    %v2355 = vpack.c.bf16 %v2352, %v2352
    %v2356 = vld [vmem:[#allocation2] sm:$0x1]
    %2358 = vset.pattern.permute.xlu0 0
    %2359 = vperm.xlu0 %2358, %v2356
    %v2360 = vpop.permute.xlu0 %2359
    %v2362 = vperm.slane %v2360, 0
    %v2364 = vsel %vm89, %v2354, 0
    %v2367 = vsel %vm89, %v2355, 0
    %2369 = vmatpush.bf16.xpose.msra.mxu0 0
    %2370 = vmatpush.bf16.xpose.msra.mxu0 0
    %2371 = vmatpush.bf16.xpose.msra.mxu0 0
    %2372 = vmatpush.bf16.xpose.msra.mxu0 0
    %2373 = vmatpush.bf16.xpose.msra.mxu0 0
    %2374 = vmatpush.bf16.xpose.msra.mxu0 0
    %2375 = vmatpush.bf16.xpose.msra.mxu0 0
    %2376 = vmatpush.bf16.xpose.msra.mxu0 %v2367
    %2377 = vmatmul.bf16.gmra.mxu0 %v2364
    %v2378 = vpop.f32.mrf.mxu0
    %v2379 = vadd.f32 %v2362, %v2378
    %v2380 = vpop.f32.mrf.mxu0
    %2381 = vdwg.mxu0
    %v2382 = vtanh.pop %v2379
    %vm2383 = vcmask 57344
    %2384 = vst.msk [vmem:[#allocation3] sm:$0x1] %vm2383, %v2382
    %v2385 = vlaneseq
    %v2386 = vand.u32 %v2385, 127
    %v2387 = vsel %vm2383, %v2382, -inf
    %2388 = vmax.xlane.f32.xlu0 %v2387
    %v2389 = vpop.xlane.xlu0 %2388
    %vm2390 = vcmp.ge.f32.partialorder %v2382, %v2389
    %v2391 = vsel %vm2390, %v2386, 8
    %v2392 = vsel %vm2383, %v2391, 2147483647
    %v2393 = vand.u32 %v2392, 65535
    %v2394 = vshra.s32 %v2392, 16
    %v2395 = vcvt.s32.f32 %v2393
    %v2396 = vcvt.s32.f32 %v2394
    %2397 = vmin.xlane.f32.xlu0 %v2396
    %v2398 = vpop.xlane.xlu0 %2397
    %vm2399 = vcmp.eq.f32.partialorder %v2396, %v2398
    %v2400 = vsel %vm2399, %v2395, inf
    %2401 = vmin.xlane.f32.xlu0 %v2400
    %v2402 = vpop.xlane.xlu0 %2401
    %v2403 = vcvt.f32.s32 %v2402
    %v2404 = vcvt.f32.s32 %v2398
    %v2405 = vshll.u32 %v2404, 16
    %v2406 = vadd.s32 %v2405, %v2403
    %2408 = vset.pattern.permute.xlu0 0
    %2409 = vperm.xlu0 %2408, %v2382
    %v2410 = vpop.permute.xlu0 %2409
    %v2412 = vsub.f32 %v2382, %v2410
    %v2413 = vadd.f32 %v2412, 1.0
    %v2414 = vmax.f32 %v2413, 0.0
    %vm2415 = vcmp.ge.s32.totalorder %v2386, 1
    %v2416 = vsel %vm2415, %v2414, 0.0
    %v2417 = vsel %vm2383, %v2416, 0.0
    %2418 = vadd.xlane.f32.xlu0 %v2417
    %v2419 = vpop.xlane.xlu0 %2418
    %v2420 = vrcp.pop 7.0
    %v2421 = vmul.f32 7.0, %v2420
    %v2422 = vsub.f32 1.0, %v2421
    %v2423 = vmul.f32 %v2420, %v2422
    %v2424 = vadd.f32 %v2420, %v2423
    %vm2425 = vweird.f32 %v2420
    %v2426 = vsel %vm2425, %v2420, %v2424
    %v2427 = vmul.f32 %v2419, %v2426
    %vm2428 = vcmp.eq.s32.totalorder %v2386, 0
    %vm2429 = vcmp.eq.s32.totalorder %v2386, 1
    %vm2430 = vcmp.eq.s32.totalorder %v2386, 2
    %v2431 = vcvt.s32.f32 %v2406
    %v2432 = vsel %vm2430, %v2431, 0.0
    %v2433 = vsel %vm2429, %v2389, %v2432
    %v2434 = vsel %vm2428, %v2427, %v2433
    %2435 = vst [vmem:[%s22] sm:$0x1] %v2434
    // Predicated region
    $region90: #{bert_ranker_forward.1} parent=1 // pred_check
      _
    $region91: #{bert_ranker_forward.1} parent=1 // pred_check_branch
      %2437 = sbr.rel (0) target = $region93
    $region92: #{bert_ranker_forward.1} parent=1 // pred_region
      _
    $region93: #{bert_ranker_forward.1} parent=1 // pred_fallthru
      _
    // Predicated region
    $region94: #{bert_ranker_forward.1} parent=1 // pred_check
      _
    $region95: #{bert_ranker_forward.1} parent=1 // pred_check_branch
      %2439 = sbr.rel (0) target = $region97
    $region96: #{bert_ranker_forward.1} parent=1 // pred_region
      %2441 = vsyncadd [#allocation4], 0
      %s2443 = sshll.u32 [#allocation3], 4
      %s2444 = int_to_ptr.vmem [resolvable:$true] %s2443
      %s2445 = sshll.u32 %s23, 4
      %s2446 = int_to_ptr.hbm [resolvable:$true] %s2445
      %2448 = dma.vmem_to_hbm [thread:$0]  %s2444, 16, %s2446, [#allocation4]
    $region97: #{bert_ranker_forward.1} parent=1 // pred_fallthru
      _
    // Predicated region
    $region98: #{bert_ranker_forward.1} parent=1 // pred_check
      _
    $region99: #{bert_ranker_forward.1} parent=1 // pred_check_branch
      %2450 = sbr.rel (0) target = $region101
    $region100: #{bert_ranker_forward.1} parent=1 // pred_region
      %2452 = vsyncadd [#allocation6], 0
      %s2454 = sshll.u32 [#allocation5], 4
      %s2455 = int_to_ptr.vmem [resolvable:$true] %s2454
      %s2456 = sshll.u32 %s24, 4
      %s2457 = int_to_ptr.hbm [resolvable:$true] %s2456
      %2459 = dma.vmem_to_hbm [thread:$0]  %s2455, 128, %s2457, [#allocation6]
    $region101: #{bert_ranker_forward.1} parent=1 // pred_fallthru
      _
    // Predicated region
    $region102: #{bert_ranker_forward.1} parent=1 // pred_check
      _
    $region103: #{bert_ranker_forward.1} parent=1 // pred_check_branch
      %2461 = sbr.rel (0) target = $region105
    $region104: #{bert_ranker_forward.1} parent=1 // pred_region
      _
    $region105: #{bert_ranker_forward.1} parent=1 // pred_fallthru
      _
    // Predicated region
    $region106: #{bert_ranker_forward.1} parent=1 // pred_check
      _
    $region107: #{bert_ranker_forward.1} parent=1 // pred_check_branch
      %2463 = sbr.rel (0) target = $region109
    $region108: #{bert_ranker_forward.1} parent=1 // pred_region
      %2465 = dma.done [#allocation4], 16
    $region109: #{bert_ranker_forward.1} parent=1 // pred_fallthru
      _
    // Predicated region
    $region110: #{bert_ranker_forward.1} parent=1 // pred_check
      _
    $region111: #{bert_ranker_forward.1} parent=1 // pred_check_branch
      %2467 = sbr.rel (0) target = $region113
    $region112: #{bert_ranker_forward.1} parent=1 // pred_region
      %2469 = dma.done [#allocation6], 128
    $region113: #{bert_ranker_forward.1} parent=1 // pred_fallthru
      _
    %2470 = vsyncpa [#allocation4], 1
    %2471 = vsyncpa [#allocation6], 1

</llo_original>
